<compile_context>
chip_gen: v7x
topology: tpu7x:2x2x1
jax: 0.10.0
libtpu: 0.0.40
codegen_flags: <defaults>
</compile_context>

<pallas_src>
import functools

import jax
import jax.numpy as jnp
from jax.experimental import pallas as pl
from jax.experimental.pallas import tpu as pltpu

LOG_STD_MAX = 2.0
LOG_STD_MIN = -20.0
_LANE = 128


def _round_up(x, m):
    return ((x + m - 1) // m) * m


def _actor_kernel(x_ref, eps_ref, w1_ref, b1_ref, w2_ref, b2_ref,
                  wmu_ref, bmu_ref, wls_ref, bls_ref,
                  pi_ref, lp_ref, *, act_dim, act_limit):
    # Trunk: Linear + ReLU, Linear + ReLU (output_activation == activation).
    h = jnp.dot(x_ref[...], w1_ref[...], preferred_element_type=jnp.float32)
    h = jnp.maximum(h + b1_ref[...], 0.0).astype(jnp.bfloat16)
    h = jnp.dot(h, w2_ref[...], preferred_element_type=jnp.float32)
    h = jnp.maximum(h + b2_ref[...], 0.0).astype(jnp.bfloat16)

    # Heads (lane-padded to 128; padding columns have zero weights/biases).
    mu = jnp.dot(h, wmu_ref[...], preferred_element_type=jnp.float32) + bmu_ref[...]
    log_std = jnp.dot(h, wls_ref[...], preferred_element_type=jnp.float32) + bls_ref[...]
    log_std = jnp.clip(log_std, LOG_STD_MIN, LOG_STD_MAX)
    std = jnp.exp(log_std)

    eps = eps_ref[...]
    pi = mu + std * eps                       # rsample (pre-tanh action)

    # Gaussian log-prob per element.
    z = (pi - mu) / std
    logp_el = -0.5 * z * z - log_std - 0.5 * jnp.log(2.0 * jnp.pi)
    # Tanh-squash correction: 2*(log 2 - pi - softplus(-2*pi)), stable softplus.
    t = -2.0 * pi
    softplus_t = jnp.maximum(t, 0.0) + jnp.log(1.0 + jnp.exp(-jnp.abs(t)))
    corr_el = 2.0 * (jnp.log(2.0) - pi - softplus_t)

    # Mask out padding lanes before reducing over the action dimension.
    lane = jax.lax.broadcasted_iota(jnp.int32, pi.shape, 1)
    valid = lane < act_dim
    logp = jnp.sum(jnp.where(valid, logp_el - corr_el, 0.0), axis=-1, keepdims=True)

    # Lane-dense (B_TILE, 128) stores; wrapper slices the real columns out.
    pi_ref[...] = (act_limit * jnp.tanh(pi)).astype(pi_ref.dtype)
    lp_ref[...] = jnp.broadcast_to(logp, lp_ref.shape).astype(lp_ref.dtype)


def init_params(key, feat_dim, hidden_sizes, act_dim):
    """Mimics torch.nn.Linear default init: U(-1/sqrt(fan_in), 1/sqrt(fan_in)).

    Weights are stored pre-transposed as [in_features, out_features] so the
    kernel computes y = x @ W + b (== torch's x @ W_torch.T + b).
    """
    assert len(hidden_sizes) == 2, "kernel is specialized for 2 hidden layers"
    h1, h2 = hidden_sizes

    def linear(key, fan_in, fan_out):
        kw, kb = jax.random.split(key)
        bound = 1.0 / jnp.sqrt(jnp.float32(fan_in))
        w = jax.random.uniform(kw, (fan_in, fan_out), jnp.float32, -bound, bound)
        b = jax.random.uniform(kb, (1, fan_out), jnp.float32, -bound, bound)
        return w, b

    k1, k2, k3, k4 = jax.random.split(key, 4)
    params = {}
    params["w1"], params["b1"] = linear(k1, feat_dim, h1)
    params["w2"], params["b2"] = linear(k2, h1, h2)
    params["wmu"], params["bmu"] = linear(k3, h2, act_dim)
    params["wls"], params["bls"] = linear(k4, h2, act_dim)
    return params


def pack_params(params):
    """Zero-pad to lane-dense shapes and cast weights to bf16 (biases stay f32)."""
    def pad2(a, rows, cols, dtype):
        out = jnp.zeros((rows, cols), dtype)
        return out.at[: a.shape[0], : a.shape[1]].set(a.astype(dtype))

    feat_dim, h1 = params["w1"].shape
    h2 = params["w2"].shape[1]
    FP = _round_up(feat_dim, _LANE)
    H1P = _round_up(h1, _LANE)
    H2P = _round_up(h2, _LANE)
    AP = _LANE

    return {
        "w1": pad2(params["w1"], FP, H1P, jnp.bfloat16),
        "b1": pad2(params["b1"], 1, H1P, jnp.float32),
        "w2": pad2(params["w2"], H1P, H2P, jnp.bfloat16),
        "b2": pad2(params["b2"], 1, H2P, jnp.float32),
        "wmu": pad2(params["wmu"], H2P, AP, jnp.bfloat16),
        "bmu": pad2(params["bmu"], 1, AP, jnp.float32),
        "wls": pad2(params["wls"], H2P, AP, jnp.bfloat16),
        "bls": pad2(params["bls"], 1, AP, jnp.float32),
    }


def squashed_gaussian_actor_forward(obs, packed, eps, *, act_dim, act_limit,
                                    b_tile=128):
    """Pallas forward of SquashedGaussianMLPActor (with_logprob=True).

    obs: [B, C, H, W] f32 (NCHW; flattened inside, fe_net = Flatten()).
    eps: [B, act_dim] f32 standard-normal noise (pass zeros for deterministic=True).
    Returns (pi_action [B, act_dim], logp_pi [B], -1) like the torch module.
    """
    B = obs.shape[0]
    x = obs.reshape(B, -1)
    feat_dim = x.shape[1]
    FP = packed["w1"].shape[0]
    AP = packed["wmu"].shape[1]
    assert feat_dim <= FP

    B_pad = _round_up(max(B, 1), b_tile)
    x_p = jnp.zeros((B_pad, FP), jnp.bfloat16).at[:B, :feat_dim].set(
        x.astype(jnp.bfloat16))
    eps_p = jnp.zeros((B_pad, AP), jnp.float32).at[:B, :act_dim].set(
        eps.astype(jnp.float32))

    grid = (B_pad // b_tile,)

    def row_spec(width):
        return pl.BlockSpec((b_tile, width), lambda i: (i, 0))

    def const_spec(arr):
        return pl.BlockSpec(arr.shape, lambda i: (0, 0))

    kernel = functools.partial(_actor_kernel, act_dim=act_dim,
                               act_limit=float(act_limit))

    pi_pad, lp_pad = pl.pallas_call(
        kernel,
        grid=grid,
        in_specs=[
            row_spec(FP),                      # x tile
            row_spec(AP),                      # eps tile
            const_spec(packed["w1"]), const_spec(packed["b1"]),
            const_spec(packed["w2"]), const_spec(packed["b2"]),
            const_spec(packed["wmu"]), const_spec(packed["bmu"]),
            const_spec(packed["wls"]), const_spec(packed["bls"]),
        ],
        out_specs=[
            pl.BlockSpec((b_tile, AP), lambda i: (i, 0)),
            pl.BlockSpec((b_tile, AP), lambda i: (i, 0)),
        ],
        out_shape=[
            jax.ShapeDtypeStruct((B_pad, AP), jnp.float32),
            jax.ShapeDtypeStruct((B_pad, AP), jnp.float32),
        ],
        compiler_params=pltpu.CompilerParams(
            dimension_semantics=("parallel",)),
    )(x_p, eps_p, packed["w1"], packed["b1"], packed["w2"], packed["b2"],
      packed["wmu"], packed["bmu"], packed["wls"], packed["bls"])

    pi_action = pi_pad[:B, :act_dim]
    logp_pi = lp_pad[:B, 0]
    return pi_action, logp_pi, -1


def reference_forward(obs, params, eps, act_dim, act_limit):
    """Plain-JAX reference mirroring the kernel math (incl. bf16 casts)."""
    bf = lambda a: a.astype(jnp.bfloat16).astype(jnp.float32)
    B = obs.shape[0]
    x = bf(obs.reshape(B, -1))
    h = jnp.maximum(x @ bf(params["w1"]) + params["b1"], 0.0)
    h = bf(h)
    h = jnp.maximum(h @ bf(params["w2"]) + params["b2"], 0.0)
    h = bf(h)
    mu = h @ bf(params["wmu"]) + params["bmu"]
    log_std = jnp.clip(h @ bf(params["wls"]) + params["bls"],
                       LOG_STD_MIN, LOG_STD_MAX)
    std = jnp.exp(log_std)
    pi = mu + std * eps
    z = (pi - mu) / std
    logp = jnp.sum(-0.5 * z * z - log_std - 0.5 * jnp.log(2.0 * jnp.pi), axis=-1)
    t = -2.0 * pi
    softplus_t = jnp.maximum(t, 0.0) + jnp.log(1.0 + jnp.exp(-jnp.abs(t)))
    logp = logp - jnp.sum(2.0 * (jnp.log(2.0) - pi - softplus_t), axis=-1)
    return act_limit * jnp.tanh(pi), logp


if __name__ == "__main__":
    key = jax.random.PRNGKey(0)
    k_obs, k_eps, k_par = jax.random.split(key, 3)

    # Small shapes consistent with the module: obs_dim=(4, 16, 16), feng='mlp',
    # hidden_sizes=(32, 32), act_dim=6, act_limit=2.0, batch=2.
    B, C, H, W = 2, 4, 16, 16
    hidden_sizes = (32, 32)
    act_dim = 6
    act_limit = 2.0
    feat_dim = C * H * W

    obs = jax.random.normal(k_obs, (B, C, H, W), jnp.float32)
    eps = jax.random.normal(k_eps, (B, act_dim), jnp.float32)  # rsample noise

    params = init_params(k_par, feat_dim, hidden_sizes, act_dim)
    packed = pack_params(params)

    pi, logp, extra = squashed_gaussian_actor_forward(
        obs, packed, eps, act_dim=act_dim, act_limit=act_limit)
    pi = jax.block_until_ready(pi)
    logp = jax.block_until_ready(logp)

    pi_ref, logp_ref = reference_forward(obs, params, eps, act_dim, act_limit)

    assert pi.shape == (B, act_dim)
    assert logp.shape == (B,)
    assert extra == -1
    assert bool(jnp.all(jnp.abs(pi) <= act_limit + 1e-6))
    assert jnp.allclose(pi, pi_ref, atol=5e-3, rtol=5e-3)
    assert jnp.allclose(logp, logp_ref, atol=5e-3, rtol=5e-3)

    print("KERNEL_OK")
</pallas_src>

<mosaic_0001>
module attributes {stable_mosaic.version = 11 : i64} {
  func.func @_actor_kernel(%arg0: i32, %arg1: memref<128x1024xbf16, #tpu.memory_space<vmem>>, %arg2: memref<128x128xf32, #tpu.memory_space<vmem>>, %arg3: memref<1024x128xbf16, #tpu.memory_space<vmem>>, %arg4: memref<1x128xf32, #tpu.memory_space<vmem>>, %arg5: memref<128x128xbf16, #tpu.memory_space<vmem>>, %arg6: memref<1x128xf32, #tpu.memory_space<vmem>>, %arg7: memref<128x128xbf16, #tpu.memory_space<vmem>>, %arg8: memref<1x128xf32, #tpu.memory_space<vmem>>, %arg9: memref<128x128xbf16, #tpu.memory_space<vmem>>, %arg10: memref<1x128xf32, #tpu.memory_space<vmem>>, %arg11: memref<128x128xf32, #tpu.memory_space<vmem>>, %arg12: memref<128x128xf32, #tpu.memory_space<vmem>>) attributes {dimension_semantics = [#tpu.dimension_semantics<parallel>], iteration_bounds = array<i64: 1>, scalar_prefetch = 0 : i64, scratch_operands = 0 : i64, tpu.core_type = #tpu.core_type<tc>, window_params = [{transform_indices = @transform_0, window_bounds = array<i64: 128, 1024>}, {transform_indices = @transform_1, window_bounds = array<i64: 128, 128>}, {pipeline_mode = #tpu.pipeline_mode<synchronous>, transform_indices = @transform_2, window_bounds = array<i64: 1024, 128>}, {pipeline_mode = #tpu.pipeline_mode<synchronous>, transform_indices = @transform_3, window_bounds = array<i64: 1, 128>}, {pipeline_mode = #tpu.pipeline_mode<synchronous>, transform_indices = @transform_4, window_bounds = array<i64: 128, 128>}, {pipeline_mode = #tpu.pipeline_mode<synchronous>, transform_indices = @transform_5, window_bounds = array<i64: 1, 128>}, {pipeline_mode = #tpu.pipeline_mode<synchronous>, transform_indices = @transform_6, window_bounds = array<i64: 128, 128>}, {pipeline_mode = #tpu.pipeline_mode<synchronous>, transform_indices = @transform_7, window_bounds = array<i64: 1, 128>}, {pipeline_mode = #tpu.pipeline_mode<synchronous>, transform_indices = @transform_8, window_bounds = array<i64: 128, 128>}, {pipeline_mode = #tpu.pipeline_mode<synchronous>, transform_indices = @transform_9, window_bounds = array<i64: 1, 128>}, {transform_indices = @transform_10, window_bounds = array<i64: 128, 128>}, {transform_indices = @transform_11, window_bounds = array<i64: 128, 128>}]} {
    %c0 = arith.constant 0 : index
    %c0_0 = arith.constant 0 : index
    %0 = vector.load %arg1[%c0, %c0_0] : memref<128x1024xbf16, #tpu.memory_space<vmem>>, vector<128x1024xbf16>
    %c0_1 = arith.constant 0 : index
    %c0_2 = arith.constant 0 : index
    %1 = vector.load %arg3[%c0_1, %c0_2] : memref<1024x128xbf16, #tpu.memory_space<vmem>>, vector<1024x128xbf16>
    %cst = arith.constant dense<0.000000e+00> : vector<128x128xf32>
    %2 = tpu.matmul %0, %1, %cst {dimension_numbers = #tpu.dot_dimension_numbers<[1], [0], [0], [1], [0, 0, 1, 1], [], []>} : vector<128x1024xbf16>, vector<1024x128xbf16>, vector<128x128xf32> -> vector<128x128xf32>
    %c0_3 = arith.constant 0 : index
    %c0_4 = arith.constant 0 : index
    %3 = vector.load %arg4[%c0_3, %c0_4] : memref<1x128xf32, #tpu.memory_space<vmem>>, vector<1x128xf32>
    %4 = vector.broadcast %3 : vector<1x128xf32> to vector<128x128xf32>
    %5 = arith.addf %2, %4 : vector<128x128xf32>
    %cst_5 = arith.constant 0.000000e+00 : f32
    %6 = vector.broadcast %cst_5 : f32 to vector<128x128xf32>
    %7 = arith.maximumf %5, %6 : vector<128x128xf32>
    %8 = arith.truncf %7 : vector<128x128xf32> to vector<128x128xbf16>
    %c0_6 = arith.constant 0 : index
    %c0_7 = arith.constant 0 : index
    %9 = vector.load %arg5[%c0_6, %c0_7] : memref<128x128xbf16, #tpu.memory_space<vmem>>, vector<128x128xbf16>
    %cst_8 = arith.constant dense<0.000000e+00> : vector<128x128xf32>
    %10 = tpu.matmul %8, %9, %cst_8 {dimension_numbers = #tpu.dot_dimension_numbers<[1], [0], [0], [1], [0, 0, 1, 1], [], []>} : vector<128x128xbf16>, vector<128x128xbf16>, vector<128x128xf32> -> vector<128x128xf32>
    %c0_9 = arith.constant 0 : index
    %c0_10 = arith.constant 0 : index
    %11 = vector.load %arg6[%c0_9, %c0_10] : memref<1x128xf32, #tpu.memory_space<vmem>>, vector<1x128xf32>
    %12 = vector.broadcast %11 : vector<1x128xf32> to vector<128x128xf32>
    %13 = arith.addf %10, %12 : vector<128x128xf32>
    %cst_11 = arith.constant 0.000000e+00 : f32
    %14 = vector.broadcast %cst_11 : f32 to vector<128x128xf32>
    %15 = arith.maximumf %13, %14 : vector<128x128xf32>
    %16 = arith.truncf %15 : vector<128x128xf32> to vector<128x128xbf16>
    %c0_12 = arith.constant 0 : index
    %c0_13 = arith.constant 0 : index
    %17 = vector.load %arg7[%c0_12, %c0_13] : memref<128x128xbf16, #tpu.memory_space<vmem>>, vector<128x128xbf16>
    %cst_14 = arith.constant dense<0.000000e+00> : vector<128x128xf32>
    %18 = tpu.matmul %16, %17, %cst_14 {dimension_numbers = #tpu.dot_dimension_numbers<[1], [0], [0], [1], [0, 0, 1, 1], [], []>} : vector<128x128xbf16>, vector<128x128xbf16>, vector<128x128xf32> -> vector<128x128xf32>
    %c0_15 = arith.constant 0 : index
    %c0_16 = arith.constant 0 : index
    %19 = vector.load %arg8[%c0_15, %c0_16] : memref<1x128xf32, #tpu.memory_space<vmem>>, vector<1x128xf32>
    %20 = vector.broadcast %19 : vector<1x128xf32> to vector<128x128xf32>
    %21 = arith.addf %18, %20 : vector<128x128xf32>
    %c0_17 = arith.constant 0 : index
    %c0_18 = arith.constant 0 : index
    %22 = vector.load %arg9[%c0_17, %c0_18] : memref<128x128xbf16, #tpu.memory_space<vmem>>, vector<128x128xbf16>
    %cst_19 = arith.constant dense<0.000000e+00> : vector<128x128xf32>
    %23 = tpu.matmul %16, %22, %cst_19 {dimension_numbers = #tpu.dot_dimension_numbers<[1], [0], [0], [1], [0, 0, 1, 1], [], []>} : vector<128x128xbf16>, vector<128x128xbf16>, vector<128x128xf32> -> vector<128x128xf32>
    %c0_20 = arith.constant 0 : index
    %c0_21 = arith.constant 0 : index
    %24 = vector.load %arg10[%c0_20, %c0_21] : memref<1x128xf32, #tpu.memory_space<vmem>>, vector<1x128xf32>
    %25 = vector.broadcast %24 : vector<1x128xf32> to vector<128x128xf32>
    %26 = arith.addf %23, %25 : vector<128x128xf32>
    %cst_22 = arith.constant -2.000000e+01 : f32
    %cst_23 = arith.constant 2.000000e+00 : f32
    %27 = vector.broadcast %cst_22 : f32 to vector<128x128xf32>
    %28 = arith.maximumf %27, %26 : vector<128x128xf32>
    %29 = vector.broadcast %cst_23 : f32 to vector<128x128xf32>
    %30 = arith.minimumf %29, %28 : vector<128x128xf32>
    %31 = math.exp %30 : vector<128x128xf32>
    %c0_24 = arith.constant 0 : index
    %c0_25 = arith.constant 0 : index
    %32 = vector.load %arg2[%c0_24, %c0_25] : memref<128x128xf32, #tpu.memory_space<vmem>>, vector<128x128xf32>
    %33 = arith.mulf %31, %32 : vector<128x128xf32>
    %34 = arith.addf %21, %33 : vector<128x128xf32>
    %35 = arith.subf %34, %21 : vector<128x128xf32>
    %36 = arith.divf %35, %31 : vector<128x128xf32>
    %cst_26 = arith.constant -5.000000e-01 : f32
    %37 = vector.broadcast %cst_26 : f32 to vector<128x128xf32>
    %38 = arith.mulf %37, %36 : vector<128x128xf32>
    %39 = arith.mulf %38, %36 : vector<128x128xf32>
    %40 = arith.subf %39, %30 : vector<128x128xf32>
    %cst_27 = arith.constant 6.28318548 : f32
    %41 = math.log %cst_27 : f32
    %cst_28 = arith.constant 5.000000e-01 : f32
    %42 = arith.mulf %cst_28, %41 : f32
    %43 = vector.broadcast %42 : f32 to vector<128x128xf32>
    %44 = arith.subf %40, %43 : vector<128x128xf32>
    %cst_29 = arith.constant -2.000000e+00 : f32
    %45 = vector.broadcast %cst_29 : f32 to vector<128x128xf32>
    %46 = arith.mulf %45, %34 : vector<128x128xf32>
    %cst_30 = arith.constant 0.000000e+00 : f32
    %47 = vector.broadcast %cst_30 : f32 to vector<128x128xf32>
    %48 = arith.maximumf %46, %47 : vector<128x128xf32>
    %49 = math.absf %46 : vector<128x128xf32>
    %cst_31 = arith.constant 0.000000e+00 : f32
    %50 = vector.broadcast %cst_31 : f32 to vector<128x128xf32>
    %51 = arith.subf %50, %49 : vector<128x128xf32>
    %52 = math.exp %51 : vector<128x128xf32>
    %cst_32 = arith.constant 1.000000e+00 : f32
    %53 = vector.broadcast %cst_32 : f32 to vector<128x128xf32>
    %54 = arith.addf %53, %52 : vector<128x128xf32>
    %55 = math.log %54 : vector<128x128xf32>
    %56 = arith.addf %48, %55 : vector<128x128xf32>
    %cst_33 = arith.constant 2.000000e+00 : f32
    %57 = math.log %cst_33 : f32
    %58 = vector.broadcast %57 : f32 to vector<128x128xf32>
    %59 = arith.subf %58, %34 : vector<128x128xf32>
    %60 = arith.subf %59, %56 : vector<128x128xf32>
    %cst_34 = arith.constant 2.000000e+00 : f32
    %61 = vector.broadcast %cst_34 : f32 to vector<128x128xf32>
    %62 = arith.mulf %61, %60 : vector<128x128xf32>
    %63 = tpu.iota {dimensions = array<i32: 1>} : vector<128x128xi32>
    %c6_i32 = arith.constant 6 : i32
    %64 = vector.broadcast %c6_i32 : i32 to vector<128x128xi32>
    %65 = arith.cmpi slt, %63, %64 : vector<128x128xi32>
    %66 = arith.subf %44, %62 : vector<128x128xf32>
    %cst_35 = arith.constant 0.000000e+00 : f32
    %67 = vector.broadcast %cst_35 : f32 to vector<128x128xf32>
    %68 = arith.select %65, %66, %67 : vector<128x128xi1>, vector<128x128xf32>
    %cst_36 = arith.constant dense<0.000000e+00> : vector<128xf32>
    %69 = vector.multi_reduction <add>, %68, %cst_36 [1] : vector<128x128xf32> to vector<128xf32>
    %70 = vector.shape_cast %69 : vector<128xf32> to vector<128x1xf32>
    %71 = math.tanh %34 : vector<128x128xf32>
    %cst_37 = arith.constant 2.000000e+00 : f32
    %72 = vector.broadcast %cst_37 : f32 to vector<128x128xf32>
    %73 = arith.mulf %72, %71 : vector<128x128xf32>
    %c0_38 = arith.constant 0 : index
    %c0_39 = arith.constant 0 : index
    %74 = vector.load %arg11[%c0_38, %c0_39] : memref<128x128xf32, #tpu.memory_space<vmem>>, vector<128x128xf32>
    tpu.vector_store %arg11[%c0_38, %c0_39], %73 {strides = array<i32>} : memref<128x128xf32, #tpu.memory_space<vmem>>, vector<128x128xf32>,
    %75 = vector.shape_cast %70 : vector<128x1xf32> to vector<128x1xf32>
    %76 = vector.broadcast %75 : vector<128x1xf32> to vector<128x128xf32>
    %c0_40 = arith.constant 0 : index
    %c0_41 = arith.constant 0 : index
    %77 = vector.load %arg12[%c0_40, %c0_41] : memref<128x128xf32, #tpu.memory_space<vmem>>, vector<128x128xf32>
    tpu.vector_store %arg12[%c0_40, %c0_41], %76 {strides = array<i32>} : memref<128x128xf32, #tpu.memory_space<vmem>>, vector<128x128xf32>,
    return
  }
  func.func @transform_0(%arg0: i32) -> (i32, i32) {
    %c0_i32 = arith.constant 0 : i32
    %c0_i32_0 = arith.constant 0 : i32
    return %arg0, %c0_i32 : i32, i32
  }
  func.func @transform_1(%arg0: i32) -> (i32, i32) {
    %c0_i32 = arith.constant 0 : i32
    %c0_i32_0 = arith.constant 0 : i32
    return %arg0, %c0_i32 : i32, i32
  }
  func.func @transform_2(%arg0: i32) -> (i32, i32) {
    %c0_i32 = arith.constant 0 : i32
    %c0_i32_0 = arith.constant 0 : i32
    %c0_i32_1 = arith.constant 0 : i32
    return %c0_i32, %c0_i32_0 : i32, i32
  }
  func.func @transform_3(%arg0: i32) -> (i32, i32) {
    %c0_i32 = arith.constant 0 : i32
    %c0_i32_0 = arith.constant 0 : i32
    %c0_i32_1 = arith.constant 0 : i32
    return %c0_i32, %c0_i32_0 : i32, i32
  }
  func.func @transform_4(%arg0: i32) -> (i32, i32) {
    %c0_i32 = arith.constant 0 : i32
    %c0_i32_0 = arith.constant 0 : i32
    %c0_i32_1 = arith.constant 0 : i32
    return %c0_i32, %c0_i32_0 : i32, i32
  }
  func.func @transform_5(%arg0: i32) -> (i32, i32) {
    %c0_i32 = arith.constant 0 : i32
    %c0_i32_0 = arith.constant 0 : i32
    %c0_i32_1 = arith.constant 0 : i32
    return %c0_i32, %c0_i32_0 : i32, i32
  }
  func.func @transform_6(%arg0: i32) -> (i32, i32) {
    %c0_i32 = arith.constant 0 : i32
    %c0_i32_0 = arith.constant 0 : i32
    %c0_i32_1 = arith.constant 0 : i32
    return %c0_i32, %c0_i32_0 : i32, i32
  }
  func.func @transform_7(%arg0: i32) -> (i32, i32) {
    %c0_i32 = arith.constant 0 : i32
    %c0_i32_0 = arith.constant 0 : i32
    %c0_i32_1 = arith.constant 0 : i32
    return %c0_i32, %c0_i32_0 : i32, i32
  }
  func.func @transform_8(%arg0: i32) -> (i32, i32) {
    %c0_i32 = arith.constant 0 : i32
    %c0_i32_0 = arith.constant 0 : i32
    %c0_i32_1 = arith.constant 0 : i32
    return %c0_i32, %c0_i32_0 : i32, i32
  }
  func.func @transform_9(%arg0: i32) -> (i32, i32) {
    %c0_i32 = arith.constant 0 : i32
    %c0_i32_0 = arith.constant 0 : i32
    %c0_i32_1 = arith.constant 0 : i32
    return %c0_i32, %c0_i32_0 : i32, i32
  }
  func.func @transform_10(%arg0: i32) -> (i32, i32) {
    %c0_i32 = arith.constant 0 : i32
    %c0_i32_0 = arith.constant 0 : i32
    return %arg0, %c0_i32 : i32, i32
  }
  func.func @transform_11(%arg0: i32) -> (i32, i32) {
    %c0_i32 = arith.constant 0 : i32
    %c0_i32_0 = arith.constant 0 : i32
    return %arg0, %c0_i32 : i32, i32
  }
}

</mosaic_0001>

<llo_original>
// kernel: tpu_custom_call.1
$region0: #{tpu_custom_call.1}
  #allocation0 [shape = 'u32[]', space=smem, size = 0x4, offset = 0x4, fixed_abs, tag = 'smem constant byte address 0x4 - core index']
  #allocation1 [shape = 'u32[144,128]{1,0:T(1,128)}', space=vmem, size = 0x12000, scoped, tag = 'internal scratch']
  %s0 = inlined_call_operand.hbm [shape: bf16[128,1024], index: 0, kind: input, shape index: {}]
  %s1 = inlined_call_operand.hbm [shape: f32[128,128], index: 1, kind: input, shape index: {}]
  %s2 = inlined_call_operand.hbm [shape: bf16[1024,128], index: 2, kind: input, shape index: {}]
  %s3 = inlined_call_operand.vmem [shape: f32[1,128], index: 3, kind: input, shape index: {}]
  %s4 = inlined_call_operand.hbm [shape: bf16[128,128], index: 4, kind: input, shape index: {}]
  %s5 = inlined_call_operand.vmem [shape: f32[1,128], index: 5, kind: input, shape index: {}]
  %s6 = inlined_call_operand.hbm [shape: bf16[128,128], index: 6, kind: input, shape index: {}]
  %s7 = inlined_call_operand.vmem [shape: f32[1,128], index: 7, kind: input, shape index: {}]
  %s8 = inlined_call_operand.hbm [shape: bf16[128,128], index: 8, kind: input, shape index: {}]
  %s9 = inlined_call_operand.vmem [shape: f32[1,128], index: 9, kind: input, shape index: {}]
  %s10 = inlined_call_operand.hbm [shape: f32[128,128], index: 10, kind: output, shape index: {0}]
  %s11 = inlined_call_operand.hbm [shape: f32[128,128], index: 11, kind: output, shape index: {1}]
  %12 = xla_tuple %s10, %s11
  %s13 = sld [smem:[#allocation0]]
  $region82: #{tpu_custom_call.1} parent=0
    _
  %s15 = ssub.s32 1, %s13
  %s16 = scalar_select 0, %s15, %s13
  $region1: #{tpu_custom_call.1} parent=0
    #allocation2 [shape = 'u8[262144]{0}', space=vmem, size = 0x40000, scoped, tag = 'input window, operand 0, single buffered']
    #allocation3 [shape = 's32[1]{0}', space=sflag, size = 0x4, scoped, tag = 'scoped memory for tpu_custom_call.1']
    #allocation4 [shape = 's32[1]{0}', space=sflag, size = 0x4, scoped, tag = 'scoped memory for tpu_custom_call.1']
    #allocation5 [shape = 'u8[65536]{0}', space=vmem, size = 0x10000, scoped, tag = 'input window, operand 1, single buffered']
    #allocation6 [shape = 's32[1]{0}', space=sflag, size = 0x4, scoped, tag = 'scoped memory for tpu_custom_call.1']
    #allocation7 [shape = 'u8[262144]{0}', space=vmem, size = 0x40000, scoped, tag = 'input window, operand 2, single buffered']
    #allocation8 [shape = 'u8[32768]{0}', space=vmem, size = 0x8000, scoped, tag = 'input window, operand 4, single buffered']
    #allocation9 [shape = 's32[1]{0}', space=sflag, size = 0x4, scoped, tag = 'scoped memory for tpu_custom_call.1']
    #allocation10 [shape = 'u8[32768]{0}', space=vmem, size = 0x8000, scoped, tag = 'input window, operand 6, single buffered']
    #allocation11 [shape = 'u8[32768]{0}', space=vmem, size = 0x8000, scoped, tag = 'input window, operand 8, single buffered']
    #allocation12 [shape = 's32[1]{0}', space=sflag, size = 0x4, scoped, tag = 'scoped memory for tpu_custom_call.1']
    #allocation13 [shape = 'u8[65536]{0}', space=vmem, size = 0x10000, scoped, tag = 'output window, operand 0, single buffered']
    #allocation14 [shape = 'u8[65536]{0}', space=vmem, size = 0x10000, scoped, tag = 'output window, operand 1, single buffered']
    #allocation15 [shape = 's32[1]{0}', space=sflag, size = 0x4, scoped, tag = 'scoped memory for tpu_custom_call.1']
    %17 = vsyncpa [#allocation3], 0
    %18 = vsyncpa [#allocation6], 0
    %19 = vsyncpa [#allocation9], 0
    %20 = vsyncpa [#allocation12], 0
    %21 = vsyncpa [#allocation4], 0
    %22 = vsyncpa [#allocation15], 0
    // Predicated region
    $region2: #{tpu_custom_call.1} parent=1 // pred_check
      _
    $region3: #{tpu_custom_call.1} parent=1 // pred_check_branch
      %24 = sbr.rel (0) target = $region5
    $region4: #{tpu_custom_call.1} parent=1 // pred_region
      %s26 = ssub.s32 8192, 8192
      %27 = vsyncadd [#allocation3], %s26
      %s28 = sshll.u32 [#allocation2], 4
      %s29 = int_to_ptr.vmem [resolvable:$true] %s28
      %34 = dma.hbm_to_vmem [thread:$0]  %s0, 8192, %s29, [#allocation3], 512, 512, 32
    $region5: #{tpu_custom_call.1} parent=1 // pred_fallthru
      _
    // Predicated region
    $region6: #{tpu_custom_call.1} parent=1 // pred_check
      _
    $region7: #{tpu_custom_call.1} parent=1 // pred_check_branch
      %36 = sbr.rel (0) target = $region9
    $region8: #{tpu_custom_call.1} parent=1 // pred_region
      %s38 = ssub.s32 2048, 2048
      %39 = vsyncadd [#allocation6], %s38
      %s40 = sshll.u32 [#allocation5], 4
      %s41 = int_to_ptr.vmem [resolvable:$true] %s40
      %46 = dma.hbm_to_vmem [thread:$0]  %s1, 2048, %s41, [#allocation6], 128, 128, 8
    $region9: #{tpu_custom_call.1} parent=1 // pred_fallthru
      _
    // Predicated region
    $region10: #{tpu_custom_call.1} parent=1 // pred_check
      _
    $region11: #{tpu_custom_call.1} parent=1 // pred_check_branch
      %48 = sbr.rel (0) target = $region13
    $region12: #{tpu_custom_call.1} parent=1 // pred_region
      %s50 = ssub.s32 8192, 8192
      %51 = vsyncadd [#allocation6], %s50
      %s52 = sshll.u32 [#allocation7], 4
      %s53 = int_to_ptr.vmem [resolvable:$true] %s52
      %58 = dma.hbm_to_vmem [thread:$0]  %s2, 8192, %s53, [#allocation6], 64, 64, 4
    $region13: #{tpu_custom_call.1} parent=1 // pred_fallthru
      _
    // Predicated region
    $region14: #{tpu_custom_call.1} parent=1 // pred_check
      _
    $region15: #{tpu_custom_call.1} parent=1 // pred_check_branch
      %60 = sbr.rel (0) target = $region17
    $region16: #{tpu_custom_call.1} parent=1 // pred_region
      _
    $region17: #{tpu_custom_call.1} parent=1 // pred_fallthru
      _
    // Predicated region
    $region18: #{tpu_custom_call.1} parent=1 // pred_check
      _
    $region19: #{tpu_custom_call.1} parent=1 // pred_check_branch
      %62 = sbr.rel (0) target = $region21
    $region20: #{tpu_custom_call.1} parent=1 // pred_region
      %s64 = ssub.s32 1024, 1024
      %65 = vsyncadd [#allocation9], %s64
      %s66 = sshll.u32 [#allocation8], 4
      %s67 = int_to_ptr.vmem [resolvable:$true] %s66
      %72 = dma.hbm_to_vmem [thread:$0]  %s4, 1024, %s67, [#allocation9], 64, 64, 4
    $region21: #{tpu_custom_call.1} parent=1 // pred_fallthru
      _
    // Predicated region
    $region22: #{tpu_custom_call.1} parent=1 // pred_check
      _
    $region23: #{tpu_custom_call.1} parent=1 // pred_check_branch
      %74 = sbr.rel (0) target = $region25
    $region24: #{tpu_custom_call.1} parent=1 // pred_region
      _
    $region25: #{tpu_custom_call.1} parent=1 // pred_fallthru
      _
    // Predicated region
    $region26: #{tpu_custom_call.1} parent=1 // pred_check
      _
    $region27: #{tpu_custom_call.1} parent=1 // pred_check_branch
      %76 = sbr.rel (0) target = $region29
    $region28: #{tpu_custom_call.1} parent=1 // pred_region
      %s78 = ssub.s32 1024, 1024
      %79 = vsyncadd [#allocation9], %s78
      %s80 = sshll.u32 [#allocation10], 4
      %s81 = int_to_ptr.vmem [resolvable:$true] %s80
      %86 = dma.hbm_to_vmem [thread:$0]  %s6, 1024, %s81, [#allocation9], 64, 64, 4
    $region29: #{tpu_custom_call.1} parent=1 // pred_fallthru
      _
    // Predicated region
    $region30: #{tpu_custom_call.1} parent=1 // pred_check
      _
    $region31: #{tpu_custom_call.1} parent=1 // pred_check_branch
      %88 = sbr.rel (0) target = $region33
    $region32: #{tpu_custom_call.1} parent=1 // pred_region
      _
    $region33: #{tpu_custom_call.1} parent=1 // pred_fallthru
      _
    // Predicated region
    $region34: #{tpu_custom_call.1} parent=1 // pred_check
      _
    $region35: #{tpu_custom_call.1} parent=1 // pred_check_branch
      %90 = sbr.rel (0) target = $region37
    $region36: #{tpu_custom_call.1} parent=1 // pred_region
      %s92 = ssub.s32 1024, 1024
      %93 = vsyncadd [#allocation12], %s92
      %s94 = sshll.u32 [#allocation11], 4
      %s95 = int_to_ptr.vmem [resolvable:$true] %s94
      %100 = dma.hbm_to_vmem [thread:$0]  %s8, 1024, %s95, [#allocation12], 64, 64, 4
    $region37: #{tpu_custom_call.1} parent=1 // pred_fallthru
      _
    // Predicated region
    $region38: #{tpu_custom_call.1} parent=1 // pred_check
      _
    $region39: #{tpu_custom_call.1} parent=1 // pred_check_branch
      %102 = sbr.rel (0) target = $region41
    $region40: #{tpu_custom_call.1} parent=1 // pred_region
      _
    $region41: #{tpu_custom_call.1} parent=1 // pred_fallthru
      _
    // Predicated region
    $region42: #{tpu_custom_call.1} parent=1 // pred_check
      _
    $region43: #{tpu_custom_call.1} parent=1 // pred_check_branch
      %104 = sbr.rel (0) target = $region45
    $region44: #{tpu_custom_call.1} parent=1 // pred_region
      %105 = dma.done [#allocation3], 8192
    $region45: #{tpu_custom_call.1} parent=1 // pred_fallthru
      _
    // Predicated region
    $region46: #{tpu_custom_call.1} parent=1 // pred_check
      _
    $region47: #{tpu_custom_call.1} parent=1 // pred_check_branch
      %107 = sbr.rel (0) target = $region49
    $region48: #{tpu_custom_call.1} parent=1 // pred_region
      %108 = dma.done [#allocation6], 2048
    $region49: #{tpu_custom_call.1} parent=1 // pred_fallthru
      _
    // Predicated region
    $region50: #{tpu_custom_call.1} parent=1 // pred_check
      _
    $region51: #{tpu_custom_call.1} parent=1 // pred_check_branch
      %110 = sbr.rel (0) target = $region53
    $region52: #{tpu_custom_call.1} parent=1 // pred_region
      %111 = dma.done [#allocation6], 8192
    $region53: #{tpu_custom_call.1} parent=1 // pred_fallthru
      _
    // Predicated region
    $region54: #{tpu_custom_call.1} parent=1 // pred_check
      _
    $region55: #{tpu_custom_call.1} parent=1 // pred_check_branch
      %113 = sbr.rel (0) target = $region57
    $region56: #{tpu_custom_call.1} parent=1 // pred_region
      %114 = dma.done [#allocation9], 1024
    $region57: #{tpu_custom_call.1} parent=1 // pred_fallthru
      _
    // Predicated region
    $region58: #{tpu_custom_call.1} parent=1 // pred_check
      _
    $region59: #{tpu_custom_call.1} parent=1 // pred_check_branch
      %116 = sbr.rel (0) target = $region61
    $region60: #{tpu_custom_call.1} parent=1 // pred_region
      %117 = dma.done [#allocation9], 1024
    $region61: #{tpu_custom_call.1} parent=1 // pred_fallthru
      _
    // Predicated region
    $region62: #{tpu_custom_call.1} parent=1 // pred_check
      _
    $region63: #{tpu_custom_call.1} parent=1 // pred_check_branch
      %119 = sbr.rel (0) target = $region65
    $region64: #{tpu_custom_call.1} parent=1 // pred_region
      %120 = dma.done [#allocation12], 1024
    $region65: #{tpu_custom_call.1} parent=1 // pred_fallthru
      _
    %v122 = vld [vmem:[#allocation2] sm:$0xff]
    %v123 = vld [vmem:[#allocation2 + $0x8] sm:$0xff]
    %v124 = vld [vmem:[#allocation2 + $0x10] sm:$0xff]
    %v125 = vld [vmem:[#allocation2 + $0x18] sm:$0xff]
    %v126 = vld [vmem:[#allocation2 + $0x20] sm:$0xff]
    %v127 = vld [vmem:[#allocation2 + $0x28] sm:$0xff]
    %v128 = vld [vmem:[#allocation2 + $0x30] sm:$0xff]
    %v129 = vld [vmem:[#allocation2 + $0x38] sm:$0xff]
    %v130 = vld [vmem:[#allocation2 + $0x40] sm:$0xff]
    %v131 = vld [vmem:[#allocation2 + $0x48] sm:$0xff]
    %v132 = vld [vmem:[#allocation2 + $0x50] sm:$0xff]
    %v133 = vld [vmem:[#allocation2 + $0x58] sm:$0xff]
    %v134 = vld [vmem:[#allocation2 + $0x60] sm:$0xff]
    %v135 = vld [vmem:[#allocation2 + $0x68] sm:$0xff]
    %v136 = vld [vmem:[#allocation2 + $0x70] sm:$0xff]
    %v137 = vld [vmem:[#allocation2 + $0x78] sm:$0xff]
    %v138 = vld [vmem:[#allocation2 + $0x80] sm:$0xff]
    %v139 = vld [vmem:[#allocation2 + $0x88] sm:$0xff]
    %v140 = vld [vmem:[#allocation2 + $0x90] sm:$0xff]
    %v141 = vld [vmem:[#allocation2 + $0x98] sm:$0xff]
    %v142 = vld [vmem:[#allocation2 + $0xa0] sm:$0xff]
    %v143 = vld [vmem:[#allocation2 + $0xa8] sm:$0xff]
    %v144 = vld [vmem:[#allocation2 + $0xb0] sm:$0xff]
    %v145 = vld [vmem:[#allocation2 + $0xb8] sm:$0xff]
    %v146 = vld [vmem:[#allocation2 + $0xc0] sm:$0xff]
    %v147 = vld [vmem:[#allocation2 + $0xc8] sm:$0xff]
    %v148 = vld [vmem:[#allocation2 + $0xd0] sm:$0xff]
    %v149 = vld [vmem:[#allocation2 + $0xd8] sm:$0xff]
    %v150 = vld [vmem:[#allocation2 + $0xe0] sm:$0xff]
    %v151 = vld [vmem:[#allocation2 + $0xe8] sm:$0xff]
    %v152 = vld [vmem:[#allocation2 + $0xf0] sm:$0xff]
    %v153 = vld [vmem:[#allocation2 + $0xf8] sm:$0xff]
    %v154 = vld [vmem:[#allocation2 + $0x100] sm:$0xff]
    %v155 = vld [vmem:[#allocation2 + $0x108] sm:$0xff]
    %v156 = vld [vmem:[#allocation2 + $0x110] sm:$0xff]
    %v157 = vld [vmem:[#allocation2 + $0x118] sm:$0xff]
    %v158 = vld [vmem:[#allocation2 + $0x120] sm:$0xff]
    %v159 = vld [vmem:[#allocation2 + $0x128] sm:$0xff]
    %v160 = vld [vmem:[#allocation2 + $0x130] sm:$0xff]
    %v161 = vld [vmem:[#allocation2 + $0x138] sm:$0xff]
    %v162 = vld [vmem:[#allocation2 + $0x140] sm:$0xff]
    %v163 = vld [vmem:[#allocation2 + $0x148] sm:$0xff]
    %v164 = vld [vmem:[#allocation2 + $0x150] sm:$0xff]
    %v165 = vld [vmem:[#allocation2 + $0x158] sm:$0xff]
    %v166 = vld [vmem:[#allocation2 + $0x160] sm:$0xff]
    %v167 = vld [vmem:[#allocation2 + $0x168] sm:$0xff]
    %v168 = vld [vmem:[#allocation2 + $0x170] sm:$0xff]
    %v169 = vld [vmem:[#allocation2 + $0x178] sm:$0xff]
    %v170 = vld [vmem:[#allocation2 + $0x180] sm:$0xff]
    %v171 = vld [vmem:[#allocation2 + $0x188] sm:$0xff]
    %v172 = vld [vmem:[#allocation2 + $0x190] sm:$0xff]
    %v173 = vld [vmem:[#allocation2 + $0x198] sm:$0xff]
    %v174 = vld [vmem:[#allocation2 + $0x1a0] sm:$0xff]
    %v175 = vld [vmem:[#allocation2 + $0x1a8] sm:$0xff]
    %v176 = vld [vmem:[#allocation2 + $0x1b0] sm:$0xff]
    %v177 = vld [vmem:[#allocation2 + $0x1b8] sm:$0xff]
    %v178 = vld [vmem:[#allocation2 + $0x1c0] sm:$0xff]
    %v179 = vld [vmem:[#allocation2 + $0x1c8] sm:$0xff]
    %v180 = vld [vmem:[#allocation2 + $0x1d0] sm:$0xff]
    %v181 = vld [vmem:[#allocation2 + $0x1d8] sm:$0xff]
    %v182 = vld [vmem:[#allocation2 + $0x1e0] sm:$0xff]
    %v183 = vld [vmem:[#allocation2 + $0x1e8] sm:$0xff]
    %v184 = vld [vmem:[#allocation2 + $0x1f0] sm:$0xff]
    %v185 = vld [vmem:[#allocation2 + $0x1f8] sm:$0xff]
    %v186 = vld [vmem:[#allocation7] sm:$0xf]
    %v187 = vld [vmem:[#allocation7 + $0x4] sm:$0xf]
    %v188 = vld [vmem:[#allocation7 + $0x8] sm:$0xf]
    %v189 = vld [vmem:[#allocation7 + $0xc] sm:$0xf]
    %v190 = vld [vmem:[#allocation7 + $0x10] sm:$0xf]
    %v191 = vld [vmem:[#allocation7 + $0x14] sm:$0xf]
    %v192 = vld [vmem:[#allocation7 + $0x18] sm:$0xf]
    %v193 = vld [vmem:[#allocation7 + $0x1c] sm:$0xf]
    %v194 = vld [vmem:[#allocation7 + $0x20] sm:$0xf]
    %v195 = vld [vmem:[#allocation7 + $0x24] sm:$0xf]
    %v196 = vld [vmem:[#allocation7 + $0x28] sm:$0xf]
    %v197 = vld [vmem:[#allocation7 + $0x2c] sm:$0xf]
    %v198 = vld [vmem:[#allocation7 + $0x30] sm:$0xf]
    %v199 = vld [vmem:[#allocation7 + $0x34] sm:$0xf]
    %v200 = vld [vmem:[#allocation7 + $0x38] sm:$0xf]
    %v201 = vld [vmem:[#allocation7 + $0x3c] sm:$0xf]
    %v202 = vld [vmem:[#allocation7 + $0x40] sm:$0xf]
    %v203 = vld [vmem:[#allocation7 + $0x44] sm:$0xf]
    %v204 = vld [vmem:[#allocation7 + $0x48] sm:$0xf]
    %v205 = vld [vmem:[#allocation7 + $0x4c] sm:$0xf]
    %v206 = vld [vmem:[#allocation7 + $0x50] sm:$0xf]
    %v207 = vld [vmem:[#allocation7 + $0x54] sm:$0xf]
    %v208 = vld [vmem:[#allocation7 + $0x58] sm:$0xf]
    %v209 = vld [vmem:[#allocation7 + $0x5c] sm:$0xf]
    %v210 = vld [vmem:[#allocation7 + $0x60] sm:$0xf]
    %v211 = vld [vmem:[#allocation7 + $0x64] sm:$0xf]
    %v212 = vld [vmem:[#allocation7 + $0x68] sm:$0xf]
    %v213 = vld [vmem:[#allocation7 + $0x6c] sm:$0xf]
    %v214 = vld [vmem:[#allocation7 + $0x70] sm:$0xf]
    %v215 = vld [vmem:[#allocation7 + $0x74] sm:$0xf]
    %v216 = vld [vmem:[#allocation7 + $0x78] sm:$0xf]
    %v217 = vld [vmem:[#allocation7 + $0x7c] sm:$0xf]
    %v218 = vld [vmem:[#allocation7 + $0x80] sm:$0xf]
    %v219 = vld [vmem:[#allocation7 + $0x84] sm:$0xf]
    %v220 = vld [vmem:[#allocation7 + $0x88] sm:$0xf]
    %v221 = vld [vmem:[#allocation7 + $0x8c] sm:$0xf]
    %v222 = vld [vmem:[#allocation7 + $0x90] sm:$0xf]
    %v223 = vld [vmem:[#allocation7 + $0x94] sm:$0xf]
    %v224 = vld [vmem:[#allocation7 + $0x98] sm:$0xf]
    %v225 = vld [vmem:[#allocation7 + $0x9c] sm:$0xf]
    %v226 = vld [vmem:[#allocation7 + $0xa0] sm:$0xf]
    %v227 = vld [vmem:[#allocation7 + $0xa4] sm:$0xf]
    %v228 = vld [vmem:[#allocation7 + $0xa8] sm:$0xf]
    %v229 = vld [vmem:[#allocation7 + $0xac] sm:$0xf]
    %v230 = vld [vmem:[#allocation7 + $0xb0] sm:$0xf]
    %v231 = vld [vmem:[#allocation7 + $0xb4] sm:$0xf]
    %v232 = vld [vmem:[#allocation7 + $0xb8] sm:$0xf]
    %v233 = vld [vmem:[#allocation7 + $0xbc] sm:$0xf]
    %v234 = vld [vmem:[#allocation7 + $0xc0] sm:$0xf]
    %v235 = vld [vmem:[#allocation7 + $0xc4] sm:$0xf]
    %v236 = vld [vmem:[#allocation7 + $0xc8] sm:$0xf]
    %v237 = vld [vmem:[#allocation7 + $0xcc] sm:$0xf]
    %v238 = vld [vmem:[#allocation7 + $0xd0] sm:$0xf]
    %v239 = vld [vmem:[#allocation7 + $0xd4] sm:$0xf]
    %v240 = vld [vmem:[#allocation7 + $0xd8] sm:$0xf]
    %v241 = vld [vmem:[#allocation7 + $0xdc] sm:$0xf]
    %v242 = vld [vmem:[#allocation7 + $0xe0] sm:$0xf]
    %v243 = vld [vmem:[#allocation7 + $0xe4] sm:$0xf]
    %v244 = vld [vmem:[#allocation7 + $0xe8] sm:$0xf]
    %v245 = vld [vmem:[#allocation7 + $0xec] sm:$0xf]
    %v246 = vld [vmem:[#allocation7 + $0xf0] sm:$0xf]
    %v247 = vld [vmem:[#allocation7 + $0xf4] sm:$0xf]
    %v248 = vld [vmem:[#allocation7 + $0xf8] sm:$0xf]
    %v249 = vld [vmem:[#allocation7 + $0xfc] sm:$0xf]
    %v250 = vld [vmem:[#allocation7 + $0x100] sm:$0xf]
    %v251 = vld [vmem:[#allocation7 + $0x104] sm:$0xf]
    %v252 = vld [vmem:[#allocation7 + $0x108] sm:$0xf]
    %v253 = vld [vmem:[#allocation7 + $0x10c] sm:$0xf]
    %v254 = vld [vmem:[#allocation7 + $0x110] sm:$0xf]
    %v255 = vld [vmem:[#allocation7 + $0x114] sm:$0xf]
    %v256 = vld [vmem:[#allocation7 + $0x118] sm:$0xf]
    %v257 = vld [vmem:[#allocation7 + $0x11c] sm:$0xf]
    %v258 = vld [vmem:[#allocation7 + $0x120] sm:$0xf]
    %v259 = vld [vmem:[#allocation7 + $0x124] sm:$0xf]
    %v260 = vld [vmem:[#allocation7 + $0x128] sm:$0xf]
    %v261 = vld [vmem:[#allocation7 + $0x12c] sm:$0xf]
    %v262 = vld [vmem:[#allocation7 + $0x130] sm:$0xf]
    %v263 = vld [vmem:[#allocation7 + $0x134] sm:$0xf]
    %v264 = vld [vmem:[#allocation7 + $0x138] sm:$0xf]
    %v265 = vld [vmem:[#allocation7 + $0x13c] sm:$0xf]
    %v266 = vld [vmem:[#allocation7 + $0x140] sm:$0xf]
    %v267 = vld [vmem:[#allocation7 + $0x144] sm:$0xf]
    %v268 = vld [vmem:[#allocation7 + $0x148] sm:$0xf]
    %v269 = vld [vmem:[#allocation7 + $0x14c] sm:$0xf]
    %v270 = vld [vmem:[#allocation7 + $0x150] sm:$0xf]
    %v271 = vld [vmem:[#allocation7 + $0x154] sm:$0xf]
    %v272 = vld [vmem:[#allocation7 + $0x158] sm:$0xf]
    %v273 = vld [vmem:[#allocation7 + $0x15c] sm:$0xf]
    %v274 = vld [vmem:[#allocation7 + $0x160] sm:$0xf]
    %v275 = vld [vmem:[#allocation7 + $0x164] sm:$0xf]
    %v276 = vld [vmem:[#allocation7 + $0x168] sm:$0xf]
    %v277 = vld [vmem:[#allocation7 + $0x16c] sm:$0xf]
    %v278 = vld [vmem:[#allocation7 + $0x170] sm:$0xf]
    %v279 = vld [vmem:[#allocation7 + $0x174] sm:$0xf]
    %v280 = vld [vmem:[#allocation7 + $0x178] sm:$0xf]
    %v281 = vld [vmem:[#allocation7 + $0x17c] sm:$0xf]
    %v282 = vld [vmem:[#allocation7 + $0x180] sm:$0xf]
    %v283 = vld [vmem:[#allocation7 + $0x184] sm:$0xf]
    %v284 = vld [vmem:[#allocation7 + $0x188] sm:$0xf]
    %v285 = vld [vmem:[#allocation7 + $0x18c] sm:$0xf]
    %v286 = vld [vmem:[#allocation7 + $0x190] sm:$0xf]
    %v287 = vld [vmem:[#allocation7 + $0x194] sm:$0xf]
    %v288 = vld [vmem:[#allocation7 + $0x198] sm:$0xf]
    %v289 = vld [vmem:[#allocation7 + $0x19c] sm:$0xf]
    %v290 = vld [vmem:[#allocation7 + $0x1a0] sm:$0xf]
    %v291 = vld [vmem:[#allocation7 + $0x1a4] sm:$0xf]
    %v292 = vld [vmem:[#allocation7 + $0x1a8] sm:$0xf]
    %v293 = vld [vmem:[#allocation7 + $0x1ac] sm:$0xf]
    %v294 = vld [vmem:[#allocation7 + $0x1b0] sm:$0xf]
    %v295 = vld [vmem:[#allocation7 + $0x1b4] sm:$0xf]
    %v296 = vld [vmem:[#allocation7 + $0x1b8] sm:$0xf]
    %v297 = vld [vmem:[#allocation7 + $0x1bc] sm:$0xf]
    %v298 = vld [vmem:[#allocation7 + $0x1c0] sm:$0xf]
    %v299 = vld [vmem:[#allocation7 + $0x1c4] sm:$0xf]
    %v300 = vld [vmem:[#allocation7 + $0x1c8] sm:$0xf]
    %v301 = vld [vmem:[#allocation7 + $0x1cc] sm:$0xf]
    %v302 = vld [vmem:[#allocation7 + $0x1d0] sm:$0xf]
    %v303 = vld [vmem:[#allocation7 + $0x1d4] sm:$0xf]
    %v304 = vld [vmem:[#allocation7 + $0x1d8] sm:$0xf]
    %v305 = vld [vmem:[#allocation7 + $0x1dc] sm:$0xf]
    %v306 = vld [vmem:[#allocation7 + $0x1e0] sm:$0xf]
    %v307 = vld [vmem:[#allocation7 + $0x1e4] sm:$0xf]
    %v308 = vld [vmem:[#allocation7 + $0x1e8] sm:$0xf]
    %v309 = vld [vmem:[#allocation7 + $0x1ec] sm:$0xf]
    %v310 = vld [vmem:[#allocation7 + $0x1f0] sm:$0xf]
    %v311 = vld [vmem:[#allocation7 + $0x1f4] sm:$0xf]
    %v312 = vld [vmem:[#allocation7 + $0x1f8] sm:$0xf]
    %v313 = vld [vmem:[#allocation7 + $0x1fc] sm:$0xf]
    %v314 = vld [vmem:[%s3] sm:$0x1]
    %v316 = vlaneseq
    %v317 = vshrl.u32 %v316, 7
    %v318 = vsub.s32 0, %v317
    %v319 = vrot.slane %v314, %v318
    %v385 = vunpack.c.l.b16 %v122
    %v386 = vunpack.c.h.b16 %v122
    %v387 = vunpack.c.l.b16 %v123
    %v388 = vunpack.c.h.b16 %v123
    %v389 = vunpack.c.l.b16 %v124
    %v390 = vunpack.c.h.b16 %v124
    %v391 = vunpack.c.l.b16 %v125
    %v392 = vunpack.c.h.b16 %v125
    %v393 = vunpack.c.l.b16 %v126
    %v394 = vunpack.c.h.b16 %v126
    %v395 = vunpack.c.l.b16 %v127
    %v396 = vunpack.c.h.b16 %v127
    %v397 = vunpack.c.l.b16 %v128
    %v398 = vunpack.c.h.b16 %v128
    %v399 = vunpack.c.l.b16 %v129
    %v400 = vunpack.c.h.b16 %v129
    %v401 = vunpack.c.l.b16 %v130
    %v402 = vunpack.c.h.b16 %v130
    %v403 = vunpack.c.l.b16 %v131
    %v404 = vunpack.c.h.b16 %v131
    %v405 = vunpack.c.l.b16 %v132
    %v406 = vunpack.c.h.b16 %v132
    %v407 = vunpack.c.l.b16 %v133
    %v408 = vunpack.c.h.b16 %v133
    %v409 = vunpack.c.l.b16 %v134
    %v410 = vunpack.c.h.b16 %v134
    %v411 = vunpack.c.l.b16 %v135
    %v412 = vunpack.c.h.b16 %v135
    %v413 = vunpack.c.l.b16 %v136
    %v414 = vunpack.c.h.b16 %v136
    %v415 = vunpack.c.l.b16 %v137
    %v416 = vunpack.c.h.b16 %v137
    %v417 = vunpack.c.l.b16 %v138
    %v418 = vunpack.c.h.b16 %v138
    %v419 = vunpack.c.l.b16 %v139
    %v420 = vunpack.c.h.b16 %v139
    %v421 = vunpack.c.l.b16 %v140
    %v422 = vunpack.c.h.b16 %v140
    %v423 = vunpack.c.l.b16 %v141
    %v424 = vunpack.c.h.b16 %v141
    %v425 = vunpack.c.l.b16 %v142
    %v426 = vunpack.c.h.b16 %v142
    %v427 = vunpack.c.l.b16 %v143
    %v428 = vunpack.c.h.b16 %v143
    %v429 = vunpack.c.l.b16 %v144
    %v430 = vunpack.c.h.b16 %v144
    %v431 = vunpack.c.l.b16 %v145
    %v432 = vunpack.c.h.b16 %v145
    %v433 = vunpack.c.l.b16 %v146
    %v434 = vunpack.c.h.b16 %v146
    %v435 = vunpack.c.l.b16 %v147
    %v436 = vunpack.c.h.b16 %v147
    %v437 = vunpack.c.l.b16 %v148
    %v438 = vunpack.c.h.b16 %v148
    %v439 = vunpack.c.l.b16 %v149
    %v440 = vunpack.c.h.b16 %v149
    %v441 = vunpack.c.l.b16 %v150
    %v442 = vunpack.c.h.b16 %v150
    %v443 = vunpack.c.l.b16 %v151
    %v444 = vunpack.c.h.b16 %v151
    %v445 = vunpack.c.l.b16 %v152
    %v446 = vunpack.c.h.b16 %v152
    %v447 = vunpack.c.l.b16 %v153
    %v448 = vunpack.c.h.b16 %v153
    %v449 = vunpack.c.l.b16 %v154
    %v450 = vunpack.c.h.b16 %v154
    %v451 = vunpack.c.l.b16 %v155
    %v452 = vunpack.c.h.b16 %v155
    %v453 = vunpack.c.l.b16 %v156
    %v454 = vunpack.c.h.b16 %v156
    %v455 = vunpack.c.l.b16 %v157
    %v456 = vunpack.c.h.b16 %v157
    %v457 = vunpack.c.l.b16 %v158
    %v458 = vunpack.c.h.b16 %v158
    %v459 = vunpack.c.l.b16 %v159
    %v460 = vunpack.c.h.b16 %v159
    %v461 = vunpack.c.l.b16 %v160
    %v462 = vunpack.c.h.b16 %v160
    %v463 = vunpack.c.l.b16 %v161
    %v464 = vunpack.c.h.b16 %v161
    %v465 = vunpack.c.l.b16 %v162
    %v466 = vunpack.c.h.b16 %v162
    %v467 = vunpack.c.l.b16 %v163
    %v468 = vunpack.c.h.b16 %v163
    %v469 = vunpack.c.l.b16 %v164
    %v470 = vunpack.c.h.b16 %v164
    %v471 = vunpack.c.l.b16 %v165
    %v472 = vunpack.c.h.b16 %v165
    %v473 = vunpack.c.l.b16 %v166
    %v474 = vunpack.c.h.b16 %v166
    %v475 = vunpack.c.l.b16 %v167
    %v476 = vunpack.c.h.b16 %v167
    %v477 = vunpack.c.l.b16 %v168
    %v478 = vunpack.c.h.b16 %v168
    %v479 = vunpack.c.l.b16 %v169
    %v480 = vunpack.c.h.b16 %v169
    %v481 = vunpack.c.l.b16 %v170
    %v482 = vunpack.c.h.b16 %v170
    %v483 = vunpack.c.l.b16 %v171
    %v484 = vunpack.c.h.b16 %v171
    %v485 = vunpack.c.l.b16 %v172
    %v486 = vunpack.c.h.b16 %v172
    %v487 = vunpack.c.l.b16 %v173
    %v488 = vunpack.c.h.b16 %v173
    %v489 = vunpack.c.l.b16 %v174
    %v490 = vunpack.c.h.b16 %v174
    %v491 = vunpack.c.l.b16 %v175
    %v492 = vunpack.c.h.b16 %v175
    %v493 = vunpack.c.l.b16 %v176
    %v494 = vunpack.c.h.b16 %v176
    %v495 = vunpack.c.l.b16 %v177
    %v496 = vunpack.c.h.b16 %v177
    %v497 = vunpack.c.l.b16 %v178
    %v498 = vunpack.c.h.b16 %v178
    %v499 = vunpack.c.l.b16 %v179
    %v500 = vunpack.c.h.b16 %v179
    %v501 = vunpack.c.l.b16 %v180
    %v502 = vunpack.c.h.b16 %v180
    %v503 = vunpack.c.l.b16 %v181
    %v504 = vunpack.c.h.b16 %v181
    %v505 = vunpack.c.l.b16 %v182
    %v506 = vunpack.c.h.b16 %v182
    %v507 = vunpack.c.l.b16 %v183
    %v508 = vunpack.c.h.b16 %v183
    %v509 = vunpack.c.l.b16 %v184
    %v510 = vunpack.c.h.b16 %v184
    %v511 = vunpack.c.l.b16 %v185
    %v512 = vunpack.c.h.b16 %v185
    %v513 = vpack.c.b16 %v393, %v385
    %v514 = vpack.c.b16 %v394, %v386
    %v515 = vpack.c.b16 %v395, %v387
    %v516 = vpack.c.b16 %v396, %v388
    %v517 = vpack.c.b16 %v397, %v389
    %v518 = vpack.c.b16 %v398, %v390
    %v519 = vpack.c.b16 %v399, %v391
    %v520 = vpack.c.b16 %v400, %v392
    %v521 = vpack.c.b16 %v409, %v401
    %v522 = vpack.c.b16 %v410, %v402
    %v523 = vpack.c.b16 %v411, %v403
    %v524 = vpack.c.b16 %v412, %v404
    %v525 = vpack.c.b16 %v413, %v405
    %v526 = vpack.c.b16 %v414, %v406
    %v527 = vpack.c.b16 %v415, %v407
    %v528 = vpack.c.b16 %v416, %v408
    %v529 = vpack.c.b16 %v425, %v417
    %v530 = vpack.c.b16 %v426, %v418
    %v531 = vpack.c.b16 %v427, %v419
    %v532 = vpack.c.b16 %v428, %v420
    %v533 = vpack.c.b16 %v429, %v421
    %v534 = vpack.c.b16 %v430, %v422
    %v535 = vpack.c.b16 %v431, %v423
    %v536 = vpack.c.b16 %v432, %v424
    %v537 = vpack.c.b16 %v441, %v433
    %v538 = vpack.c.b16 %v442, %v434
    %v539 = vpack.c.b16 %v443, %v435
    %v540 = vpack.c.b16 %v444, %v436
    %v541 = vpack.c.b16 %v445, %v437
    %v542 = vpack.c.b16 %v446, %v438
    %v543 = vpack.c.b16 %v447, %v439
    %v544 = vpack.c.b16 %v448, %v440
    %v545 = vpack.c.b16 %v457, %v449
    %v546 = vpack.c.b16 %v458, %v450
    %v547 = vpack.c.b16 %v459, %v451
    %v548 = vpack.c.b16 %v460, %v452
    %v549 = vpack.c.b16 %v461, %v453
    %v550 = vpack.c.b16 %v462, %v454
    %v551 = vpack.c.b16 %v463, %v455
    %v552 = vpack.c.b16 %v464, %v456
    %v553 = vpack.c.b16 %v473, %v465
    %v554 = vpack.c.b16 %v474, %v466
    %v555 = vpack.c.b16 %v475, %v467
    %v556 = vpack.c.b16 %v476, %v468
    %v557 = vpack.c.b16 %v477, %v469
    %v558 = vpack.c.b16 %v478, %v470
    %v559 = vpack.c.b16 %v479, %v471
    %v560 = vpack.c.b16 %v480, %v472
    %v561 = vpack.c.b16 %v489, %v481
    %v562 = vpack.c.b16 %v490, %v482
    %v563 = vpack.c.b16 %v491, %v483
    %v564 = vpack.c.b16 %v492, %v484
    %v565 = vpack.c.b16 %v493, %v485
    %v566 = vpack.c.b16 %v494, %v486
    %v567 = vpack.c.b16 %v495, %v487
    %v568 = vpack.c.b16 %v496, %v488
    %v569 = vpack.c.b16 %v505, %v497
    %v570 = vpack.c.b16 %v506, %v498
    %v571 = vpack.c.b16 %v507, %v499
    %v572 = vpack.c.b16 %v508, %v500
    %v573 = vpack.c.b16 %v509, %v501
    %v574 = vpack.c.b16 %v510, %v502
    %v575 = vpack.c.b16 %v511, %v503
    %v576 = vpack.c.b16 %v512, %v504
    %v769 = vunpack.c.l.b16 %v186
    %v770 = vunpack.c.l.b16 %v187
    %v771 = vunpack.c.l.b16 %v188
    %v772 = vunpack.c.l.b16 %v189
    %v773 = vunpack.c.l.b16 %v190
    %v774 = vunpack.c.l.b16 %v191
    %v775 = vunpack.c.l.b16 %v192
    %v776 = vunpack.c.l.b16 %v193
    %v777 = vunpack.c.l.b16 %v194
    %v778 = vunpack.c.l.b16 %v195
    %v779 = vunpack.c.l.b16 %v196
    %v780 = vunpack.c.l.b16 %v197
    %v781 = vunpack.c.l.b16 %v198
    %v782 = vunpack.c.l.b16 %v199
    %v783 = vunpack.c.l.b16 %v200
    %v784 = vunpack.c.l.b16 %v201
    %v785 = vunpack.c.l.b16 %v202
    %v786 = vunpack.c.l.b16 %v203
    %v787 = vunpack.c.l.b16 %v204
    %v788 = vunpack.c.l.b16 %v205
    %v789 = vunpack.c.l.b16 %v206
    %v790 = vunpack.c.l.b16 %v207
    %v791 = vunpack.c.l.b16 %v208
    %v792 = vunpack.c.l.b16 %v209
    %v793 = vunpack.c.l.b16 %v210
    %v794 = vunpack.c.l.b16 %v211
    %v795 = vunpack.c.l.b16 %v212
    %v796 = vunpack.c.l.b16 %v213
    %v797 = vunpack.c.l.b16 %v214
    %v798 = vunpack.c.l.b16 %v215
    %v799 = vunpack.c.l.b16 %v216
    %v800 = vunpack.c.l.b16 %v217
    %v801 = vunpack.c.l.b16 %v218
    %v802 = vunpack.c.l.b16 %v219
    %v803 = vunpack.c.l.b16 %v220
    %v804 = vunpack.c.l.b16 %v221
    %v805 = vunpack.c.l.b16 %v222
    %v806 = vunpack.c.l.b16 %v223
    %v807 = vunpack.c.l.b16 %v224
    %v808 = vunpack.c.l.b16 %v225
    %v809 = vunpack.c.l.b16 %v226
    %v810 = vunpack.c.l.b16 %v227
    %v811 = vunpack.c.l.b16 %v228
    %v812 = vunpack.c.l.b16 %v229
    %v813 = vunpack.c.l.b16 %v230
    %v814 = vunpack.c.l.b16 %v231
    %v815 = vunpack.c.l.b16 %v232
    %v816 = vunpack.c.l.b16 %v233
    %v817 = vunpack.c.l.b16 %v234
    %v818 = vunpack.c.l.b16 %v235
    %v819 = vunpack.c.l.b16 %v236
    %v820 = vunpack.c.l.b16 %v237
    %v821 = vunpack.c.l.b16 %v238
    %v822 = vunpack.c.l.b16 %v239
    %v823 = vunpack.c.l.b16 %v240
    %v824 = vunpack.c.l.b16 %v241
    %v825 = vunpack.c.l.b16 %v242
    %v826 = vunpack.c.l.b16 %v243
    %v827 = vunpack.c.l.b16 %v244
    %v828 = vunpack.c.l.b16 %v245
    %v829 = vunpack.c.l.b16 %v246
    %v830 = vunpack.c.l.b16 %v247
    %v831 = vunpack.c.l.b16 %v248
    %v832 = vunpack.c.l.b16 %v249
    %v833 = vunpack.c.l.b16 %v250
    %v834 = vunpack.c.l.b16 %v251
    %v835 = vunpack.c.l.b16 %v252
    %v836 = vunpack.c.l.b16 %v253
    %v837 = vunpack.c.l.b16 %v254
    %v838 = vunpack.c.l.b16 %v255
    %v839 = vunpack.c.l.b16 %v256
    %v840 = vunpack.c.l.b16 %v257
    %v841 = vunpack.c.l.b16 %v258
    %v842 = vunpack.c.l.b16 %v259
    %v843 = vunpack.c.l.b16 %v260
    %v844 = vunpack.c.l.b16 %v261
    %v845 = vunpack.c.l.b16 %v262
    %v846 = vunpack.c.l.b16 %v263
    %v847 = vunpack.c.l.b16 %v264
    %v848 = vunpack.c.l.b16 %v265
    %v849 = vunpack.c.l.b16 %v266
    %v850 = vunpack.c.l.b16 %v267
    %v851 = vunpack.c.l.b16 %v268
    %v852 = vunpack.c.l.b16 %v269
    %v853 = vunpack.c.l.b16 %v270
    %v854 = vunpack.c.l.b16 %v271
    %v855 = vunpack.c.l.b16 %v272
    %v856 = vunpack.c.l.b16 %v273
    %v857 = vunpack.c.l.b16 %v274
    %v858 = vunpack.c.l.b16 %v275
    %v859 = vunpack.c.l.b16 %v276
    %v860 = vunpack.c.l.b16 %v277
    %v861 = vunpack.c.l.b16 %v278
    %v862 = vunpack.c.l.b16 %v279
    %v863 = vunpack.c.l.b16 %v280
    %v864 = vunpack.c.l.b16 %v281
    %v865 = vunpack.c.l.b16 %v282
    %v866 = vunpack.c.l.b16 %v283
    %v867 = vunpack.c.l.b16 %v284
    %v868 = vunpack.c.l.b16 %v285
    %v869 = vunpack.c.l.b16 %v286
    %v870 = vunpack.c.l.b16 %v287
    %v871 = vunpack.c.l.b16 %v288
    %v872 = vunpack.c.l.b16 %v289
    %v873 = vunpack.c.l.b16 %v290
    %v874 = vunpack.c.l.b16 %v291
    %v875 = vunpack.c.l.b16 %v292
    %v876 = vunpack.c.l.b16 %v293
    %v877 = vunpack.c.l.b16 %v294
    %v878 = vunpack.c.l.b16 %v295
    %v879 = vunpack.c.l.b16 %v296
    %v880 = vunpack.c.l.b16 %v297
    %v881 = vunpack.c.l.b16 %v298
    %v882 = vunpack.c.l.b16 %v299
    %v883 = vunpack.c.l.b16 %v300
    %v884 = vunpack.c.l.b16 %v301
    %v885 = vunpack.c.l.b16 %v302
    %v886 = vunpack.c.l.b16 %v303
    %v887 = vunpack.c.l.b16 %v304
    %v888 = vunpack.c.l.b16 %v305
    %v889 = vunpack.c.l.b16 %v306
    %v890 = vunpack.c.l.b16 %v307
    %v891 = vunpack.c.l.b16 %v308
    %v892 = vunpack.c.l.b16 %v309
    %v893 = vunpack.c.l.b16 %v310
    %v894 = vunpack.c.l.b16 %v311
    %v895 = vunpack.c.l.b16 %v312
    %v896 = vunpack.c.l.b16 %v313
    %v897 = vpack.c.b16 %v770, %v769
    %v898 = vpack.c.b16 %v772, %v771
    %v899 = vpack.c.b16 %v774, %v773
    %v900 = vpack.c.b16 %v776, %v775
    %v901 = vpack.c.b16 %v778, %v777
    %v902 = vpack.c.b16 %v780, %v779
    %v903 = vpack.c.b16 %v782, %v781
    %v904 = vpack.c.b16 %v784, %v783
    %v905 = vpack.c.b16 %v786, %v785
    %v906 = vpack.c.b16 %v788, %v787
    %v907 = vpack.c.b16 %v790, %v789
    %v908 = vpack.c.b16 %v792, %v791
    %v909 = vpack.c.b16 %v794, %v793
    %v910 = vpack.c.b16 %v796, %v795
    %v911 = vpack.c.b16 %v798, %v797
    %v912 = vpack.c.b16 %v800, %v799
    %v913 = vpack.c.b16 %v802, %v801
    %v914 = vpack.c.b16 %v804, %v803
    %v915 = vpack.c.b16 %v806, %v805
    %v916 = vpack.c.b16 %v808, %v807
    %v917 = vpack.c.b16 %v810, %v809
    %v918 = vpack.c.b16 %v812, %v811
    %v919 = vpack.c.b16 %v814, %v813
    %v920 = vpack.c.b16 %v816, %v815
    %v921 = vpack.c.b16 %v818, %v817
    %v922 = vpack.c.b16 %v820, %v819
    %v923 = vpack.c.b16 %v822, %v821
    %v924 = vpack.c.b16 %v824, %v823
    %v925 = vpack.c.b16 %v826, %v825
    %v926 = vpack.c.b16 %v828, %v827
    %v927 = vpack.c.b16 %v830, %v829
    %v928 = vpack.c.b16 %v832, %v831
    %v929 = vpack.c.b16 %v834, %v833
    %v930 = vpack.c.b16 %v836, %v835
    %v931 = vpack.c.b16 %v838, %v837
    %v932 = vpack.c.b16 %v840, %v839
    %v933 = vpack.c.b16 %v842, %v841
    %v934 = vpack.c.b16 %v844, %v843
    %v935 = vpack.c.b16 %v846, %v845
    %v936 = vpack.c.b16 %v848, %v847
    %v937 = vpack.c.b16 %v850, %v849
    %v938 = vpack.c.b16 %v852, %v851
    %v939 = vpack.c.b16 %v854, %v853
    %v940 = vpack.c.b16 %v856, %v855
    %v941 = vpack.c.b16 %v858, %v857
    %v942 = vpack.c.b16 %v860, %v859
    %v943 = vpack.c.b16 %v862, %v861
    %v944 = vpack.c.b16 %v864, %v863
    %v945 = vpack.c.b16 %v866, %v865
    %v946 = vpack.c.b16 %v868, %v867
    %v947 = vpack.c.b16 %v870, %v869
    %v948 = vpack.c.b16 %v872, %v871
    %v949 = vpack.c.b16 %v874, %v873
    %v950 = vpack.c.b16 %v876, %v875
    %v951 = vpack.c.b16 %v878, %v877
    %v952 = vpack.c.b16 %v880, %v879
    %v953 = vpack.c.b16 %v882, %v881
    %v954 = vpack.c.b16 %v884, %v883
    %v955 = vpack.c.b16 %v886, %v885
    %v956 = vpack.c.b16 %v888, %v887
    %v957 = vpack.c.b16 %v890, %v889
    %v958 = vpack.c.b16 %v892, %v891
    %v959 = vpack.c.b16 %v894, %v893
    %v960 = vpack.c.b16 %v896, %v895
    %1025 = vmatprep.subr.bf16.mxu0 0
    %1026 = vmatpush1.bf16.msra.mxu0 %v897
    %1027 = vmatprep.subr.bf16.mxu0 0
    %1028 = vmatpush1.bf16.msra.mxu0 %v898
    %1029 = vmatprep.subr.bf16.mxu0 0
    %1030 = vmatpush1.bf16.msra.mxu0 %v899
    %1031 = vmatprep.subr.bf16.mxu0 0
    %1032 = vmatpush1.bf16.msra.mxu0 %v900
    %1033 = vmatprep.subr.bf16.mxu0 0
    %1034 = vmatpush1.bf16.msra.mxu0 %v901
    %1035 = vmatprep.subr.bf16.mxu0 0
    %1036 = vmatpush1.bf16.msra.mxu0 %v902
    %1037 = vmatprep.subr.bf16.mxu0 0
    %1038 = vmatpush1.bf16.msra.mxu0 %v903
    %1039 = vmatprep.subr.bf16.mxu0 0
    %1040 = vmatpush1.bf16.msra.mxu0 %v904
    %1041 = vmatprep.subr.bf16.mxu0 0
    %1042 = vmatpush1.bf16.msra.mxu0 %v905
    %1043 = vmatprep.subr.bf16.mxu0 0
    %1044 = vmatpush1.bf16.msra.mxu0 %v906
    %1045 = vmatprep.subr.bf16.mxu0 0
    %1046 = vmatpush1.bf16.msra.mxu0 %v907
    %1047 = vmatprep.subr.bf16.mxu0 0
    %1048 = vmatpush1.bf16.msra.mxu0 %v908
    %1049 = vmatprep.subr.bf16.mxu0 0
    %1050 = vmatpush1.bf16.msra.mxu0 %v909
    %1051 = vmatprep.subr.bf16.mxu0 0
    %1052 = vmatpush1.bf16.msra.mxu0 %v910
    %1053 = vmatprep.subr.bf16.mxu0 0
    %1054 = vmatpush1.bf16.msra.mxu0 %v911
    %1055 = vmatprep.subr.bf16.mxu0 0
    %1056 = vmatpush1.bf16.msra.mxu0 %v912
    %1057 = vmatprep.mubr.bf16.mxu0 %v514
    %1058 = vmatmul.mubr.bf16.gmra.mrb[0].mxu0 %v513
    %v1059 = vpop.f32.mrb[0].mxu0
    %v1060 = vadd.f32 %v319, %v1059
    %v1061 = vpop.f32.mrb[0].mxu0
    %v1062 = vpop.f32.mrb[0].mxu0
    %v1063 = vadd.f32 %v319, %v1062
    %v1064 = vpop.f32.mrb[0].mxu0
    %1065 = vmatprep.mubr.bf16.mxu0 %v522
    %1066 = vmatmul.mubr.bf16.gmra.mrb[0].mxu0 %v521
    %v1067 = vpop.f32.mrb[0].mxu0
    %v1068 = vadd.f32 %v319, %v1067
    %v1069 = vpop.f32.mrb[0].mxu0
    %v1070 = vpop.f32.mrb[0].mxu0
    %v1071 = vadd.f32 %v319, %v1070
    %v1072 = vpop.f32.mrb[0].mxu0
    %1073 = vmatprep.mubr.bf16.mxu0 %v530
    %1074 = vmatmul.mubr.bf16.gmra.mrb[0].mxu0 %v529
    %v1075 = vpop.f32.mrb[0].mxu0
    %v1076 = vadd.f32 %v319, %v1075
    %v1077 = vpop.f32.mrb[0].mxu0
    %v1078 = vpop.f32.mrb[0].mxu0
    %v1079 = vadd.f32 %v319, %v1078
    %v1080 = vpop.f32.mrb[0].mxu0
    %1081 = vmatprep.mubr.bf16.mxu0 %v538
    %1082 = vmatmul.mubr.bf16.gmra.mrb[0].mxu0 %v537
    %v1083 = vpop.f32.mrb[0].mxu0
    %v1084 = vadd.f32 %v319, %v1083
    %v1085 = vpop.f32.mrb[0].mxu0
    %v1086 = vpop.f32.mrb[0].mxu0
    %v1087 = vadd.f32 %v319, %v1086
    %v1088 = vpop.f32.mrb[0].mxu0
    %1089 = vmatprep.mubr.bf16.mxu0 %v546
    %1090 = vmatmul.mubr.bf16.gmra.mrb[0].mxu0 %v545
    %v1091 = vpop.f32.mrb[0].mxu0
    %v1092 = vadd.f32 %v319, %v1091
    %v1093 = vpop.f32.mrb[0].mxu0
    %v1094 = vpop.f32.mrb[0].mxu0
    %v1095 = vadd.f32 %v319, %v1094
    %v1096 = vpop.f32.mrb[0].mxu0
    %1097 = vmatprep.mubr.bf16.mxu0 %v554
    %1098 = vmatmul.mubr.bf16.gmra.mrb[0].mxu0 %v553
    %v1099 = vpop.f32.mrb[0].mxu0
    %v1100 = vadd.f32 %v319, %v1099
    %v1101 = vpop.f32.mrb[0].mxu0
    %v1102 = vpop.f32.mrb[0].mxu0
    %v1103 = vadd.f32 %v319, %v1102
    %v1104 = vpop.f32.mrb[0].mxu0
    %1105 = vmatprep.mubr.bf16.mxu0 %v562
    %1106 = vmatmul.mubr.bf16.gmra.mrb[0].mxu0 %v561
    %v1107 = vpop.f32.mrb[0].mxu0
    %v1108 = vadd.f32 %v319, %v1107
    %v1109 = vpop.f32.mrb[0].mxu0
    %v1110 = vpop.f32.mrb[0].mxu0
    %v1111 = vadd.f32 %v319, %v1110
    %v1112 = vpop.f32.mrb[0].mxu0
    %1113 = vmatprep.mubr.bf16.mxu0 %v570
    %1114 = vmatmul.mubr.bf16.gmra.mrb[0].mxu0 %v569
    %v1115 = vpop.f32.mrb[0].mxu0
    %v1116 = vadd.f32 %v319, %v1115
    %v1117 = vpop.f32.mrb[0].mxu0
    %v1118 = vpop.f32.mrb[0].mxu0
    %v1119 = vadd.f32 %v319, %v1118
    %v1120 = vpop.f32.mrb[0].mxu0
    %1121 = vdwg.mxu0
    %1122 = vmatprep.subr.bf16.mxu0 0
    %1123 = vmatpush1.bf16.msra.mxu0 %v913
    %1124 = vmatprep.subr.bf16.mxu0 0
    %1125 = vmatpush1.bf16.msra.mxu0 %v914
    %1126 = vmatprep.subr.bf16.mxu0 0
    %1127 = vmatpush1.bf16.msra.mxu0 %v915
    %1128 = vmatprep.subr.bf16.mxu0 0
    %1129 = vmatpush1.bf16.msra.mxu0 %v916
    %1130 = vmatprep.subr.bf16.mxu0 0
    %1131 = vmatpush1.bf16.msra.mxu0 %v917
    %1132 = vmatprep.subr.bf16.mxu0 0
    %1133 = vmatpush1.bf16.msra.mxu0 %v918
    %1134 = vmatprep.subr.bf16.mxu0 0
    %1135 = vmatpush1.bf16.msra.mxu0 %v919
    %1136 = vmatprep.subr.bf16.mxu0 0
    %1137 = vmatpush1.bf16.msra.mxu0 %v920
    %1138 = vmatprep.subr.bf16.mxu0 0
    %1139 = vmatpush1.bf16.msra.mxu0 %v921
    %1140 = vmatprep.subr.bf16.mxu0 0
    %1141 = vmatpush1.bf16.msra.mxu0 %v922
    %1142 = vmatprep.subr.bf16.mxu0 0
    %1143 = vmatpush1.bf16.msra.mxu0 %v923
    %1144 = vmatprep.subr.bf16.mxu0 0
    %1145 = vmatpush1.bf16.msra.mxu0 %v924
    %1146 = vmatprep.subr.bf16.mxu0 0
    %1147 = vmatpush1.bf16.msra.mxu0 %v925
    %1148 = vmatprep.subr.bf16.mxu0 0
    %1149 = vmatpush1.bf16.msra.mxu0 %v926
    %1150 = vmatprep.subr.bf16.mxu0 0
    %1151 = vmatpush1.bf16.msra.mxu0 %v927
    %1152 = vmatprep.subr.bf16.mxu0 0
    %1153 = vmatpush1.bf16.msra.mxu0 %v928
    %1154 = vmatprep.mubr.bf16.mxu0 %v516
    %1155 = vmatmul.mubr.bf16.gmra.mrb[0].mxu0 %v515
    %v1156 = vpop.f32.mrb[0].mxu0
    %v1157 = vadd.f32 %v1060, %v1156
    %v1158 = vpop.f32.mrb[0].mxu0
    %v1159 = vpop.f32.mrb[0].mxu0
    %v1160 = vadd.f32 %v1063, %v1159
    %v1161 = vpop.f32.mrb[0].mxu0
    %1162 = vmatprep.mubr.bf16.mxu0 %v524
    %1163 = vmatmul.mubr.bf16.gmra.mrb[0].mxu0 %v523
    %v1164 = vpop.f32.mrb[0].mxu0
    %v1165 = vadd.f32 %v1068, %v1164
    %v1166 = vpop.f32.mrb[0].mxu0
    %v1167 = vpop.f32.mrb[0].mxu0
    %v1168 = vadd.f32 %v1071, %v1167
    %v1169 = vpop.f32.mrb[0].mxu0
    %1170 = vmatprep.mubr.bf16.mxu0 %v532
    %1171 = vmatmul.mubr.bf16.gmra.mrb[0].mxu0 %v531
    %v1172 = vpop.f32.mrb[0].mxu0
    %v1173 = vadd.f32 %v1076, %v1172
    %v1174 = vpop.f32.mrb[0].mxu0
    %v1175 = vpop.f32.mrb[0].mxu0
    %v1176 = vadd.f32 %v1079, %v1175
    %v1177 = vpop.f32.mrb[0].mxu0
    %1178 = vmatprep.mubr.bf16.mxu0 %v540
    %1179 = vmatmul.mubr.bf16.gmra.mrb[0].mxu0 %v539
    %v1180 = vpop.f32.mrb[0].mxu0
    %v1181 = vadd.f32 %v1084, %v1180
    %v1182 = vpop.f32.mrb[0].mxu0
    %v1183 = vpop.f32.mrb[0].mxu0
    %v1184 = vadd.f32 %v1087, %v1183
    %v1185 = vpop.f32.mrb[0].mxu0
    %1186 = vmatprep.mubr.bf16.mxu0 %v548
    %1187 = vmatmul.mubr.bf16.gmra.mrb[0].mxu0 %v547
    %v1188 = vpop.f32.mrb[0].mxu0
    %v1189 = vadd.f32 %v1092, %v1188
    %v1190 = vpop.f32.mrb[0].mxu0
    %v1191 = vpop.f32.mrb[0].mxu0
    %v1192 = vadd.f32 %v1095, %v1191
    %v1193 = vpop.f32.mrb[0].mxu0
    %1194 = vmatprep.mubr.bf16.mxu0 %v556
    %1195 = vmatmul.mubr.bf16.gmra.mrb[0].mxu0 %v555
    %v1196 = vpop.f32.mrb[0].mxu0
    %v1197 = vadd.f32 %v1100, %v1196
    %v1198 = vpop.f32.mrb[0].mxu0
    %v1199 = vpop.f32.mrb[0].mxu0
    %v1200 = vadd.f32 %v1103, %v1199
    %v1201 = vpop.f32.mrb[0].mxu0
    %1202 = vmatprep.mubr.bf16.mxu0 %v564
    %1203 = vmatmul.mubr.bf16.gmra.mrb[0].mxu0 %v563
    %v1204 = vpop.f32.mrb[0].mxu0
    %v1205 = vadd.f32 %v1108, %v1204
    %v1206 = vpop.f32.mrb[0].mxu0
    %v1207 = vpop.f32.mrb[0].mxu0
    %v1208 = vadd.f32 %v1111, %v1207
    %v1209 = vpop.f32.mrb[0].mxu0
    %1210 = vmatprep.mubr.bf16.mxu0 %v572
    %1211 = vmatmul.mubr.bf16.gmra.mrb[0].mxu0 %v571
    %v1212 = vpop.f32.mrb[0].mxu0
    %v1213 = vadd.f32 %v1116, %v1212
    %v1214 = vpop.f32.mrb[0].mxu0
    %v1215 = vpop.f32.mrb[0].mxu0
    %v1216 = vadd.f32 %v1119, %v1215
    %v1217 = vpop.f32.mrb[0].mxu0
    %1218 = vdwg.mxu0
    %1219 = vmatprep.subr.bf16.mxu0 0
    %1220 = vmatpush1.bf16.msra.mxu0 %v929
    %1221 = vmatprep.subr.bf16.mxu0 0
    %1222 = vmatpush1.bf16.msra.mxu0 %v930
    %1223 = vmatprep.subr.bf16.mxu0 0
    %1224 = vmatpush1.bf16.msra.mxu0 %v931
    %1225 = vmatprep.subr.bf16.mxu0 0
    %1226 = vmatpush1.bf16.msra.mxu0 %v932
    %1227 = vmatprep.subr.bf16.mxu0 0
    %1228 = vmatpush1.bf16.msra.mxu0 %v933
    %1229 = vmatprep.subr.bf16.mxu0 0
    %1230 = vmatpush1.bf16.msra.mxu0 %v934
    %1231 = vmatprep.subr.bf16.mxu0 0
    %1232 = vmatpush1.bf16.msra.mxu0 %v935
    %1233 = vmatprep.subr.bf16.mxu0 0
    %1234 = vmatpush1.bf16.msra.mxu0 %v936
    %1235 = vmatprep.subr.bf16.mxu0 0
    %1236 = vmatpush1.bf16.msra.mxu0 %v937
    %1237 = vmatprep.subr.bf16.mxu0 0
    %1238 = vmatpush1.bf16.msra.mxu0 %v938
    %1239 = vmatprep.subr.bf16.mxu0 0
    %1240 = vmatpush1.bf16.msra.mxu0 %v939
    %1241 = vmatprep.subr.bf16.mxu0 0
    %1242 = vmatpush1.bf16.msra.mxu0 %v940
    %1243 = vmatprep.subr.bf16.mxu0 0
    %1244 = vmatpush1.bf16.msra.mxu0 %v941
    %1245 = vmatprep.subr.bf16.mxu0 0
    %1246 = vmatpush1.bf16.msra.mxu0 %v942
    %1247 = vmatprep.subr.bf16.mxu0 0
    %1248 = vmatpush1.bf16.msra.mxu0 %v943
    %1249 = vmatprep.subr.bf16.mxu0 0
    %1250 = vmatpush1.bf16.msra.mxu0 %v944
    %1251 = vmatprep.mubr.bf16.mxu0 %v518
    %1252 = vmatmul.mubr.bf16.gmra.mrb[0].mxu0 %v517
    %v1253 = vpop.f32.mrb[0].mxu0
    %v1254 = vadd.f32 %v1157, %v1253
    %v1255 = vpop.f32.mrb[0].mxu0
    %v1256 = vpop.f32.mrb[0].mxu0
    %v1257 = vadd.f32 %v1160, %v1256
    %v1258 = vpop.f32.mrb[0].mxu0
    %1259 = vmatprep.mubr.bf16.mxu0 %v526
    %1260 = vmatmul.mubr.bf16.gmra.mrb[0].mxu0 %v525
    %v1261 = vpop.f32.mrb[0].mxu0
    %v1262 = vadd.f32 %v1165, %v1261
    %v1263 = vpop.f32.mrb[0].mxu0
    %v1264 = vpop.f32.mrb[0].mxu0
    %v1265 = vadd.f32 %v1168, %v1264
    %v1266 = vpop.f32.mrb[0].mxu0
    %1267 = vmatprep.mubr.bf16.mxu0 %v534
    %1268 = vmatmul.mubr.bf16.gmra.mrb[0].mxu0 %v533
    %v1269 = vpop.f32.mrb[0].mxu0
    %v1270 = vadd.f32 %v1173, %v1269
    %v1271 = vpop.f32.mrb[0].mxu0
    %v1272 = vpop.f32.mrb[0].mxu0
    %v1273 = vadd.f32 %v1176, %v1272
    %v1274 = vpop.f32.mrb[0].mxu0
    %1275 = vmatprep.mubr.bf16.mxu0 %v542
    %1276 = vmatmul.mubr.bf16.gmra.mrb[0].mxu0 %v541
    %v1277 = vpop.f32.mrb[0].mxu0
    %v1278 = vadd.f32 %v1181, %v1277
    %v1279 = vpop.f32.mrb[0].mxu0
    %v1280 = vpop.f32.mrb[0].mxu0
    %v1281 = vadd.f32 %v1184, %v1280
    %v1282 = vpop.f32.mrb[0].mxu0
    %1283 = vmatprep.mubr.bf16.mxu0 %v550
    %1284 = vmatmul.mubr.bf16.gmra.mrb[0].mxu0 %v549
    %v1285 = vpop.f32.mrb[0].mxu0
    %v1286 = vadd.f32 %v1189, %v1285
    %v1287 = vpop.f32.mrb[0].mxu0
    %v1288 = vpop.f32.mrb[0].mxu0
    %v1289 = vadd.f32 %v1192, %v1288
    %v1290 = vpop.f32.mrb[0].mxu0
    %1291 = vmatprep.mubr.bf16.mxu0 %v558
    %1292 = vmatmul.mubr.bf16.gmra.mrb[0].mxu0 %v557
    %v1293 = vpop.f32.mrb[0].mxu0
    %v1294 = vadd.f32 %v1197, %v1293
    %v1295 = vpop.f32.mrb[0].mxu0
    %v1296 = vpop.f32.mrb[0].mxu0
    %v1297 = vadd.f32 %v1200, %v1296
    %v1298 = vpop.f32.mrb[0].mxu0
    %1299 = vmatprep.mubr.bf16.mxu0 %v566
    %1300 = vmatmul.mubr.bf16.gmra.mrb[0].mxu0 %v565
    %v1301 = vpop.f32.mrb[0].mxu0
    %v1302 = vadd.f32 %v1205, %v1301
    %v1303 = vpop.f32.mrb[0].mxu0
    %v1304 = vpop.f32.mrb[0].mxu0
    %v1305 = vadd.f32 %v1208, %v1304
    %v1306 = vpop.f32.mrb[0].mxu0
    %1307 = vmatprep.mubr.bf16.mxu0 %v574
    %1308 = vmatmul.mubr.bf16.gmra.mrb[0].mxu0 %v573
    %v1309 = vpop.f32.mrb[0].mxu0
    %v1310 = vadd.f32 %v1213, %v1309
    %v1311 = vpop.f32.mrb[0].mxu0
    %v1312 = vpop.f32.mrb[0].mxu0
    %v1313 = vadd.f32 %v1216, %v1312
    %v1314 = vpop.f32.mrb[0].mxu0
    %1315 = vdwg.mxu0
    %1316 = vmatprep.subr.bf16.mxu0 0
    %1317 = vmatpush1.bf16.msra.mxu0 %v945
    %1318 = vmatprep.subr.bf16.mxu0 0
    %1319 = vmatpush1.bf16.msra.mxu0 %v946
    %1320 = vmatprep.subr.bf16.mxu0 0
    %1321 = vmatpush1.bf16.msra.mxu0 %v947
    %1322 = vmatprep.subr.bf16.mxu0 0
    %1323 = vmatpush1.bf16.msra.mxu0 %v948
    %1324 = vmatprep.subr.bf16.mxu0 0
    %1325 = vmatpush1.bf16.msra.mxu0 %v949
    %1326 = vmatprep.subr.bf16.mxu0 0
    %1327 = vmatpush1.bf16.msra.mxu0 %v950
    %1328 = vmatprep.subr.bf16.mxu0 0
    %1329 = vmatpush1.bf16.msra.mxu0 %v951
    %1330 = vmatprep.subr.bf16.mxu0 0
    %1331 = vmatpush1.bf16.msra.mxu0 %v952
    %1332 = vmatprep.subr.bf16.mxu0 0
    %1333 = vmatpush1.bf16.msra.mxu0 %v953
    %1334 = vmatprep.subr.bf16.mxu0 0
    %1335 = vmatpush1.bf16.msra.mxu0 %v954
    %1336 = vmatprep.subr.bf16.mxu0 0
    %1337 = vmatpush1.bf16.msra.mxu0 %v955
    %1338 = vmatprep.subr.bf16.mxu0 0
    %1339 = vmatpush1.bf16.msra.mxu0 %v956
    %1340 = vmatprep.subr.bf16.mxu0 0
    %1341 = vmatpush1.bf16.msra.mxu0 %v957
    %1342 = vmatprep.subr.bf16.mxu0 0
    %1343 = vmatpush1.bf16.msra.mxu0 %v958
    %1344 = vmatprep.subr.bf16.mxu0 0
    %1345 = vmatpush1.bf16.msra.mxu0 %v959
    %1346 = vmatprep.subr.bf16.mxu0 0
    %1347 = vmatpush1.bf16.msra.mxu0 %v960
    %1348 = vmatprep.mubr.bf16.mxu0 %v520
    %1349 = vmatmul.mubr.bf16.gmra.mrb[0].mxu0 %v519
    %v1350 = vpop.f32.mrb[0].mxu0
    %v1351 = vadd.f32 %v1254, %v1350
    %v1352 = vpop.f32.mrb[0].mxu0
    %v1353 = vpop.f32.mrb[0].mxu0
    %v1354 = vadd.f32 %v1257, %v1353
    %v1355 = vpop.f32.mrb[0].mxu0
    %1356 = vmatprep.mubr.bf16.mxu0 %v528
    %1357 = vmatmul.mubr.bf16.gmra.mrb[0].mxu0 %v527
    %v1358 = vpop.f32.mrb[0].mxu0
    %v1359 = vadd.f32 %v1262, %v1358
    %v1360 = vpop.f32.mrb[0].mxu0
    %v1361 = vpop.f32.mrb[0].mxu0
    %v1362 = vadd.f32 %v1265, %v1361
    %v1363 = vpop.f32.mrb[0].mxu0
    %1364 = vmatprep.mubr.bf16.mxu0 %v536
    %1365 = vmatmul.mubr.bf16.gmra.mrb[0].mxu0 %v535
    %v1366 = vpop.f32.mrb[0].mxu0
    %v1367 = vadd.f32 %v1270, %v1366
    %v1368 = vpop.f32.mrb[0].mxu0
    %v1369 = vpop.f32.mrb[0].mxu0
    %v1370 = vadd.f32 %v1273, %v1369
    %v1371 = vpop.f32.mrb[0].mxu0
    %1372 = vmatprep.mubr.bf16.mxu0 %v544
    %1373 = vmatmul.mubr.bf16.gmra.mrb[0].mxu0 %v543
    %v1374 = vpop.f32.mrb[0].mxu0
    %v1375 = vadd.f32 %v1278, %v1374
    %v1376 = vpop.f32.mrb[0].mxu0
    %v1377 = vpop.f32.mrb[0].mxu0
    %v1378 = vadd.f32 %v1281, %v1377
    %v1379 = vpop.f32.mrb[0].mxu0
    %1380 = vmatprep.mubr.bf16.mxu0 %v552
    %1381 = vmatmul.mubr.bf16.gmra.mrb[0].mxu0 %v551
    %v1382 = vpop.f32.mrb[0].mxu0
    %v1383 = vadd.f32 %v1286, %v1382
    %v1384 = vpop.f32.mrb[0].mxu0
    %v1385 = vpop.f32.mrb[0].mxu0
    %v1386 = vadd.f32 %v1289, %v1385
    %v1387 = vpop.f32.mrb[0].mxu0
    %1388 = vmatprep.mubr.bf16.mxu0 %v560
    %1389 = vmatmul.mubr.bf16.gmra.mrb[0].mxu0 %v559
    %v1390 = vpop.f32.mrb[0].mxu0
    %v1391 = vadd.f32 %v1294, %v1390
    %v1392 = vpop.f32.mrb[0].mxu0
    %v1393 = vpop.f32.mrb[0].mxu0
    %v1394 = vadd.f32 %v1297, %v1393
    %v1395 = vpop.f32.mrb[0].mxu0
    %1396 = vmatprep.mubr.bf16.mxu0 %v568
    %1397 = vmatmul.mubr.bf16.gmra.mrb[0].mxu0 %v567
    %v1398 = vpop.f32.mrb[0].mxu0
    %v1399 = vadd.f32 %v1302, %v1398
    %v1400 = vpop.f32.mrb[0].mxu0
    %v1401 = vpop.f32.mrb[0].mxu0
    %v1402 = vadd.f32 %v1305, %v1401
    %v1403 = vpop.f32.mrb[0].mxu0
    %1404 = vmatprep.mubr.bf16.mxu0 %v576
    %1405 = vmatmul.mubr.bf16.gmra.mrb[0].mxu0 %v575
    %v1406 = vpop.f32.mrb[0].mxu0
    %v1407 = vadd.f32 %v1310, %v1406
    %v1408 = vpop.f32.mrb[0].mxu0
    %v1409 = vpop.f32.mrb[0].mxu0
    %v1410 = vadd.f32 %v1313, %v1409
    %v1411 = vpop.f32.mrb[0].mxu0
    %1412 = vdwg.mxu0
    %v1413 = vmax.f32 %v1351, 0.0
    %v1414 = vmax.f32 %v1354, 0.0
    %v1415 = vmax.f32 %v1359, 0.0
    %v1416 = vmax.f32 %v1362, 0.0
    %v1417 = vmax.f32 %v1367, 0.0
    %v1418 = vmax.f32 %v1370, 0.0
    %v1419 = vmax.f32 %v1375, 0.0
    %v1420 = vmax.f32 %v1378, 0.0
    %v1421 = vmax.f32 %v1383, 0.0
    %v1422 = vmax.f32 %v1386, 0.0
    %v1423 = vmax.f32 %v1391, 0.0
    %v1424 = vmax.f32 %v1394, 0.0
    %v1425 = vmax.f32 %v1399, 0.0
    %v1426 = vmax.f32 %v1402, 0.0
    %v1427 = vmax.f32 %v1407, 0.0
    %v1428 = vmax.f32 %v1410, 0.0
    %v1429 = vpack.c.bf16 %v1414, %v1413
    %v1430 = vpack.c.bf16 %v1416, %v1415
    %v1431 = vpack.c.bf16 %v1418, %v1417
    %v1432 = vpack.c.bf16 %v1420, %v1419
    %v1433 = vpack.c.bf16 %v1422, %v1421
    %v1434 = vpack.c.bf16 %v1424, %v1423
    %v1435 = vpack.c.bf16 %v1426, %v1425
    %v1436 = vpack.c.bf16 %v1428, %v1427
    %v1437 = vld [vmem:[#allocation8] sm:$0xf]
    %v1438 = vld [vmem:[#allocation8 + $0x4] sm:$0xf]
    %v1439 = vld [vmem:[#allocation8 + $0x8] sm:$0xf]
    %v1440 = vld [vmem:[#allocation8 + $0xc] sm:$0xf]
    %v1441 = vld [vmem:[#allocation8 + $0x10] sm:$0xf]
    %v1442 = vld [vmem:[#allocation8 + $0x14] sm:$0xf]
    %v1443 = vld [vmem:[#allocation8 + $0x18] sm:$0xf]
    %v1444 = vld [vmem:[#allocation8 + $0x1c] sm:$0xf]
    %v1445 = vld [vmem:[#allocation8 + $0x20] sm:$0xf]
    %v1446 = vld [vmem:[#allocation8 + $0x24] sm:$0xf]
    %v1447 = vld [vmem:[#allocation8 + $0x28] sm:$0xf]
    %v1448 = vld [vmem:[#allocation8 + $0x2c] sm:$0xf]
    %v1449 = vld [vmem:[#allocation8 + $0x30] sm:$0xf]
    %v1450 = vld [vmem:[#allocation8 + $0x34] sm:$0xf]
    %v1451 = vld [vmem:[#allocation8 + $0x38] sm:$0xf]
    %v1452 = vld [vmem:[#allocation8 + $0x3c] sm:$0xf]
    %v1453 = vld [vmem:[%s5] sm:$0x1]
    %v1455 = vlaneseq
    %v1456 = vshrl.u32 %v1455, 7
    %v1457 = vsub.s32 0, %v1456
    %v1458 = vrot.slane %v1453, %v1457
    %v1476 = vunpack.c.l.b16 %v1437
    %v1477 = vunpack.c.l.b16 %v1438
    %v1478 = vunpack.c.l.b16 %v1439
    %v1479 = vunpack.c.l.b16 %v1440
    %v1480 = vunpack.c.l.b16 %v1441
    %v1481 = vunpack.c.l.b16 %v1442
    %v1482 = vunpack.c.l.b16 %v1443
    %v1483 = vunpack.c.l.b16 %v1444
    %v1484 = vunpack.c.l.b16 %v1445
    %v1485 = vunpack.c.l.b16 %v1446
    %v1486 = vunpack.c.l.b16 %v1447
    %v1487 = vunpack.c.l.b16 %v1448
    %v1488 = vunpack.c.l.b16 %v1449
    %v1489 = vunpack.c.l.b16 %v1450
    %v1490 = vunpack.c.l.b16 %v1451
    %v1491 = vunpack.c.l.b16 %v1452
    %v1492 = vpack.c.b16 %v1477, %v1476
    %v1493 = vpack.c.b16 %v1479, %v1478
    %v1494 = vpack.c.b16 %v1481, %v1480
    %v1495 = vpack.c.b16 %v1483, %v1482
    %v1496 = vpack.c.b16 %v1485, %v1484
    %v1497 = vpack.c.b16 %v1487, %v1486
    %v1498 = vpack.c.b16 %v1489, %v1488
    %v1499 = vpack.c.b16 %v1491, %v1490
    %1508 = vmatprep.subr.bf16.mxu0 0
    %1509 = vmatpush1.bf16.msra.mxu0 %v1492
    %1510 = vmatprep.subr.bf16.mxu0 0
    %1511 = vmatpush1.bf16.msra.mxu0 %v1493
    %1512 = vmatprep.subr.bf16.mxu0 0
    %1513 = vmatpush1.bf16.msra.mxu0 %v1494
    %1514 = vmatprep.subr.bf16.mxu0 0
    %1515 = vmatpush1.bf16.msra.mxu0 %v1495
    %1516 = vmatprep.subr.bf16.mxu0 0
    %1517 = vmatpush1.bf16.msra.mxu0 %v1496
    %1518 = vmatprep.subr.bf16.mxu0 0
    %1519 = vmatpush1.bf16.msra.mxu0 %v1497
    %1520 = vmatprep.subr.bf16.mxu0 0
    %1521 = vmatpush1.bf16.msra.mxu0 %v1498
    %1522 = vmatprep.subr.bf16.mxu0 0
    %1523 = vmatpush1.bf16.msra.mxu0 %v1499
    %1524 = vmatprep.subr.bf16.mxu0 0
    %1525 = vmatpush1.bf16.msra.mxu0 0
    %1526 = vmatprep.subr.bf16.mxu0 0
    %1527 = vmatpush1.bf16.msra.mxu0 0
    %1528 = vmatprep.subr.bf16.mxu0 0
    %1529 = vmatpush1.bf16.msra.mxu0 0
    %1530 = vmatprep.subr.bf16.mxu0 0
    %1531 = vmatpush1.bf16.msra.mxu0 0
    %1532 = vmatprep.subr.bf16.mxu0 0
    %1533 = vmatpush1.bf16.msra.mxu0 0
    %1534 = vmatprep.subr.bf16.mxu0 0
    %1535 = vmatpush1.bf16.msra.mxu0 0
    %1536 = vmatprep.subr.bf16.mxu0 0
    %1537 = vmatpush1.bf16.msra.mxu0 0
    %1538 = vmatprep.subr.bf16.mxu0 0
    %1539 = vmatpush1.bf16.msra.mxu0 0
    %1540 = vmatprep.mubr.bf16.mxu0 0
    %1541 = vmatmul.mubr.bf16.gmra.mrb[0].mxu0 %v1429
    %v1542 = vpop.f32.mrb[0].mxu0
    %v1543 = vadd.f32 %v1458, %v1542
    %v1544 = vpop.f32.mrb[0].mxu0
    %v1545 = vpop.f32.mrb[0].mxu0
    %v1546 = vadd.f32 %v1458, %v1545
    %v1547 = vpop.f32.mrb[0].mxu0
    %1548 = vmatprep.mubr.bf16.mxu0 0
    %1549 = vmatmul.mubr.bf16.gmra.mrb[0].mxu0 %v1430
    %v1550 = vpop.f32.mrb[0].mxu0
    %v1551 = vadd.f32 %v1458, %v1550
    %v1552 = vpop.f32.mrb[0].mxu0
    %v1553 = vpop.f32.mrb[0].mxu0
    %v1554 = vadd.f32 %v1458, %v1553
    %v1555 = vpop.f32.mrb[0].mxu0
    %1556 = vmatprep.mubr.bf16.mxu0 0
    %1557 = vmatmul.mubr.bf16.gmra.mrb[0].mxu0 %v1431
    %v1558 = vpop.f32.mrb[0].mxu0
    %v1559 = vadd.f32 %v1458, %v1558
    %v1560 = vpop.f32.mrb[0].mxu0
    %v1561 = vpop.f32.mrb[0].mxu0
    %v1562 = vadd.f32 %v1458, %v1561
    %v1563 = vpop.f32.mrb[0].mxu0
    %1564 = vmatprep.mubr.bf16.mxu0 0
    %1565 = vmatmul.mubr.bf16.gmra.mrb[0].mxu0 %v1432
    %v1566 = vpop.f32.mrb[0].mxu0
    %v1567 = vadd.f32 %v1458, %v1566
    %v1568 = vpop.f32.mrb[0].mxu0
    %v1569 = vpop.f32.mrb[0].mxu0
    %v1570 = vadd.f32 %v1458, %v1569
    %v1571 = vpop.f32.mrb[0].mxu0
    %1572 = vmatprep.mubr.bf16.mxu0 0
    %1573 = vmatmul.mubr.bf16.gmra.mrb[0].mxu0 %v1433
    %v1574 = vpop.f32.mrb[0].mxu0
    %v1575 = vadd.f32 %v1458, %v1574
    %v1576 = vpop.f32.mrb[0].mxu0
    %v1577 = vpop.f32.mrb[0].mxu0
    %v1578 = vadd.f32 %v1458, %v1577
    %v1579 = vpop.f32.mrb[0].mxu0
    %1580 = vmatprep.mubr.bf16.mxu0 0
    %1581 = vmatmul.mubr.bf16.gmra.mrb[0].mxu0 %v1434
    %v1582 = vpop.f32.mrb[0].mxu0
    %v1583 = vadd.f32 %v1458, %v1582
    %v1584 = vpop.f32.mrb[0].mxu0
    %v1585 = vpop.f32.mrb[0].mxu0
    %v1586 = vadd.f32 %v1458, %v1585
    %v1587 = vpop.f32.mrb[0].mxu0
    %1588 = vmatprep.mubr.bf16.mxu0 0
    %1589 = vmatmul.mubr.bf16.gmra.mrb[0].mxu0 %v1435
    %v1590 = vpop.f32.mrb[0].mxu0
    %v1591 = vadd.f32 %v1458, %v1590
    %v1592 = vpop.f32.mrb[0].mxu0
    %v1593 = vpop.f32.mrb[0].mxu0
    %v1594 = vadd.f32 %v1458, %v1593
    %v1595 = vpop.f32.mrb[0].mxu0
    %1596 = vmatprep.mubr.bf16.mxu0 0
    %1597 = vmatmul.mubr.bf16.gmra.mrb[0].mxu0 %v1436
    %v1598 = vpop.f32.mrb[0].mxu0
    %v1599 = vadd.f32 %v1458, %v1598
    %v1600 = vpop.f32.mrb[0].mxu0
    %v1601 = vpop.f32.mrb[0].mxu0
    %v1602 = vadd.f32 %v1458, %v1601
    %v1603 = vpop.f32.mrb[0].mxu0
    %1604 = vdwg.mxu0
    %v1605 = vmax.f32 %v1543, 0.0
    %v1606 = vmax.f32 %v1546, 0.0
    %v1607 = vmax.f32 %v1551, 0.0
    %v1608 = vmax.f32 %v1554, 0.0
    %v1609 = vmax.f32 %v1559, 0.0
    %v1610 = vmax.f32 %v1562, 0.0
    %v1611 = vmax.f32 %v1567, 0.0
    %v1612 = vmax.f32 %v1570, 0.0
    %v1613 = vmax.f32 %v1575, 0.0
    %v1614 = vmax.f32 %v1578, 0.0
    %v1615 = vmax.f32 %v1583, 0.0
    %v1616 = vmax.f32 %v1586, 0.0
    %v1617 = vmax.f32 %v1591, 0.0
    %v1618 = vmax.f32 %v1594, 0.0
    %v1619 = vmax.f32 %v1599, 0.0
    %v1620 = vmax.f32 %v1602, 0.0
    %v1621 = vpack.c.bf16 %v1606, %v1605
    %v1622 = vpack.c.bf16 %v1608, %v1607
    %v1623 = vpack.c.bf16 %v1610, %v1609
    %v1624 = vpack.c.bf16 %v1612, %v1611
    %v1625 = vpack.c.bf16 %v1614, %v1613
    %v1626 = vpack.c.bf16 %v1616, %v1615
    %v1627 = vpack.c.bf16 %v1618, %v1617
    %v1628 = vpack.c.bf16 %v1620, %v1619
    %v1629 = vld [vmem:[#allocation10] sm:$0xf]
    %v1630 = vld [vmem:[#allocation10 + $0x4] sm:$0xf]
    %v1631 = vld [vmem:[#allocation10 + $0x8] sm:$0xf]
    %v1632 = vld [vmem:[#allocation10 + $0xc] sm:$0xf]
    %v1633 = vld [vmem:[#allocation10 + $0x10] sm:$0xf]
    %v1634 = vld [vmem:[#allocation10 + $0x14] sm:$0xf]
    %v1635 = vld [vmem:[#allocation10 + $0x18] sm:$0xf]
    %v1636 = vld [vmem:[#allocation10 + $0x1c] sm:$0xf]
    %v1637 = vld [vmem:[#allocation10 + $0x20] sm:$0xf]
    %v1638 = vld [vmem:[#allocation10 + $0x24] sm:$0xf]
    %v1639 = vld [vmem:[#allocation10 + $0x28] sm:$0xf]
    %v1640 = vld [vmem:[#allocation10 + $0x2c] sm:$0xf]
    %v1641 = vld [vmem:[#allocation10 + $0x30] sm:$0xf]
    %v1642 = vld [vmem:[#allocation10 + $0x34] sm:$0xf]
    %v1643 = vld [vmem:[#allocation10 + $0x38] sm:$0xf]
    %v1644 = vld [vmem:[#allocation10 + $0x3c] sm:$0xf]
    %v1645 = vld [vmem:[%s7] sm:$0x1]
    %v1647 = vlaneseq
    %v1648 = vshrl.u32 %v1647, 7
    %v1649 = vsub.s32 0, %v1648
    %v1650 = vrot.slane %v1645, %v1649
    %v1668 = vunpack.c.l.b16 %v1629
    %v1669 = vunpack.c.l.b16 %v1630
    %v1670 = vunpack.c.l.b16 %v1631
    %v1671 = vunpack.c.l.b16 %v1632
    %v1672 = vunpack.c.l.b16 %v1633
    %v1673 = vunpack.c.l.b16 %v1634
    %v1674 = vunpack.c.l.b16 %v1635
    %v1675 = vunpack.c.l.b16 %v1636
    %v1676 = vunpack.c.l.b16 %v1637
    %v1677 = vunpack.c.l.b16 %v1638
    %v1678 = vunpack.c.l.b16 %v1639
    %v1679 = vunpack.c.l.b16 %v1640
    %v1680 = vunpack.c.l.b16 %v1641
    %v1681 = vunpack.c.l.b16 %v1642
    %v1682 = vunpack.c.l.b16 %v1643
    %v1683 = vunpack.c.l.b16 %v1644
    %v1684 = vpack.c.b16 %v1669, %v1668
    %v1685 = vpack.c.b16 %v1671, %v1670
    %v1686 = vpack.c.b16 %v1673, %v1672
    %v1687 = vpack.c.b16 %v1675, %v1674
    %v1688 = vpack.c.b16 %v1677, %v1676
    %v1689 = vpack.c.b16 %v1679, %v1678
    %v1690 = vpack.c.b16 %v1681, %v1680
    %v1691 = vpack.c.b16 %v1683, %v1682
    %1700 = vmatprep.subr.bf16.mxu0 0
    %1701 = vmatpush1.bf16.msra.mxu0 %v1684
    %1702 = vmatprep.subr.bf16.mxu0 0
    %1703 = vmatpush1.bf16.msra.mxu0 %v1685
    %1704 = vmatprep.subr.bf16.mxu0 0
    %1705 = vmatpush1.bf16.msra.mxu0 %v1686
    %1706 = vmatprep.subr.bf16.mxu0 0
    %1707 = vmatpush1.bf16.msra.mxu0 %v1687
    %1708 = vmatprep.subr.bf16.mxu0 0
    %1709 = vmatpush1.bf16.msra.mxu0 %v1688
    %1710 = vmatprep.subr.bf16.mxu0 0
    %1711 = vmatpush1.bf16.msra.mxu0 %v1689
    %1712 = vmatprep.subr.bf16.mxu0 0
    %1713 = vmatpush1.bf16.msra.mxu0 %v1690
    %1714 = vmatprep.subr.bf16.mxu0 0
    %1715 = vmatpush1.bf16.msra.mxu0 %v1691
    %1716 = vmatprep.subr.bf16.mxu0 0
    %1717 = vmatpush1.bf16.msra.mxu0 0
    %1718 = vmatprep.subr.bf16.mxu0 0
    %1719 = vmatpush1.bf16.msra.mxu0 0
    %1720 = vmatprep.subr.bf16.mxu0 0
    %1721 = vmatpush1.bf16.msra.mxu0 0
    %1722 = vmatprep.subr.bf16.mxu0 0
    %1723 = vmatpush1.bf16.msra.mxu0 0
    %1724 = vmatprep.subr.bf16.mxu0 0
    %1725 = vmatpush1.bf16.msra.mxu0 0
    %1726 = vmatprep.subr.bf16.mxu0 0
    %1727 = vmatpush1.bf16.msra.mxu0 0
    %1728 = vmatprep.subr.bf16.mxu0 0
    %1729 = vmatpush1.bf16.msra.mxu0 0
    %1730 = vmatprep.subr.bf16.mxu0 0
    %1731 = vmatpush1.bf16.msra.mxu0 0
    %1732 = vmatprep.mubr.bf16.mxu0 0
    %1733 = vmatmul.mubr.bf16.gmra.mrb[0].mxu0 %v1621
    %v1734 = vpop.f32.mrb[0].mxu0
    %v1735 = vadd.f32 %v1650, %v1734
    %v1736 = vpop.f32.mrb[0].mxu0
    %v1737 = vpop.f32.mrb[0].mxu0
    %v1738 = vadd.f32 %v1650, %v1737
    %v1739 = vpop.f32.mrb[0].mxu0
    %1740 = vmatprep.mubr.bf16.mxu0 0
    %1741 = vmatmul.mubr.bf16.gmra.mrb[0].mxu0 %v1622
    %v1742 = vpop.f32.mrb[0].mxu0
    %v1743 = vadd.f32 %v1650, %v1742
    %v1744 = vpop.f32.mrb[0].mxu0
    %v1745 = vpop.f32.mrb[0].mxu0
    %v1746 = vadd.f32 %v1650, %v1745
    %v1747 = vpop.f32.mrb[0].mxu0
    %1748 = vmatprep.mubr.bf16.mxu0 0
    %1749 = vmatmul.mubr.bf16.gmra.mrb[0].mxu0 %v1623
    %v1750 = vpop.f32.mrb[0].mxu0
    %v1751 = vadd.f32 %v1650, %v1750
    %v1752 = vpop.f32.mrb[0].mxu0
    %v1753 = vpop.f32.mrb[0].mxu0
    %v1754 = vadd.f32 %v1650, %v1753
    %v1755 = vpop.f32.mrb[0].mxu0
    %1756 = vmatprep.mubr.bf16.mxu0 0
    %1757 = vmatmul.mubr.bf16.gmra.mrb[0].mxu0 %v1624
    %v1758 = vpop.f32.mrb[0].mxu0
    %v1759 = vadd.f32 %v1650, %v1758
    %v1760 = vpop.f32.mrb[0].mxu0
    %v1761 = vpop.f32.mrb[0].mxu0
    %v1762 = vadd.f32 %v1650, %v1761
    %v1763 = vpop.f32.mrb[0].mxu0
    %1764 = vmatprep.mubr.bf16.mxu0 0
    %1765 = vmatmul.mubr.bf16.gmra.mrb[0].mxu0 %v1625
    %v1766 = vpop.f32.mrb[0].mxu0
    %v1767 = vadd.f32 %v1650, %v1766
    %v1768 = vpop.f32.mrb[0].mxu0
    %v1769 = vpop.f32.mrb[0].mxu0
    %v1770 = vadd.f32 %v1650, %v1769
    %v1771 = vpop.f32.mrb[0].mxu0
    %1772 = vmatprep.mubr.bf16.mxu0 0
    %1773 = vmatmul.mubr.bf16.gmra.mrb[0].mxu0 %v1626
    %v1774 = vpop.f32.mrb[0].mxu0
    %v1775 = vadd.f32 %v1650, %v1774
    %v1776 = vpop.f32.mrb[0].mxu0
    %v1777 = vpop.f32.mrb[0].mxu0
    %v1778 = vadd.f32 %v1650, %v1777
    %v1779 = vpop.f32.mrb[0].mxu0
    %1780 = vmatprep.mubr.bf16.mxu0 0
    %1781 = vmatmul.mubr.bf16.gmra.mrb[0].mxu0 %v1627
    %v1782 = vpop.f32.mrb[0].mxu0
    %v1783 = vadd.f32 %v1650, %v1782
    %v1784 = vpop.f32.mrb[0].mxu0
    %v1785 = vpop.f32.mrb[0].mxu0
    %v1786 = vadd.f32 %v1650, %v1785
    %v1787 = vpop.f32.mrb[0].mxu0
    %1788 = vmatprep.mubr.bf16.mxu0 0
    %1789 = vmatmul.mubr.bf16.gmra.mrb[0].mxu0 %v1628
    %v1790 = vpop.f32.mrb[0].mxu0
    %v1791 = vadd.f32 %v1650, %v1790
    %v1792 = vpop.f32.mrb[0].mxu0
    %v1793 = vpop.f32.mrb[0].mxu0
    %v1794 = vadd.f32 %v1650, %v1793
    %v1795 = vpop.f32.mrb[0].mxu0
    %1796 = vdwg.mxu0
    %v1797 = vld [vmem:[#allocation11] sm:$0xf]
    %v1798 = vld [vmem:[#allocation11 + $0x4] sm:$0xf]
    %v1799 = vld [vmem:[#allocation11 + $0x8] sm:$0xf]
    %v1800 = vld [vmem:[#allocation11 + $0xc] sm:$0xf]
    %v1801 = vld [vmem:[#allocation11 + $0x10] sm:$0xf]
    %v1802 = vld [vmem:[#allocation11 + $0x14] sm:$0xf]
    %v1803 = vld [vmem:[#allocation11 + $0x18] sm:$0xf]
    %v1804 = vld [vmem:[#allocation11 + $0x1c] sm:$0xf]
    %v1805 = vld [vmem:[#allocation11 + $0x20] sm:$0xf]
    %v1806 = vld [vmem:[#allocation11 + $0x24] sm:$0xf]
    %v1807 = vld [vmem:[#allocation11 + $0x28] sm:$0xf]
    %v1808 = vld [vmem:[#allocation11 + $0x2c] sm:$0xf]
    %v1809 = vld [vmem:[#allocation11 + $0x30] sm:$0xf]
    %v1810 = vld [vmem:[#allocation11 + $0x34] sm:$0xf]
    %v1811 = vld [vmem:[#allocation11 + $0x38] sm:$0xf]
    %v1812 = vld [vmem:[#allocation11 + $0x3c] sm:$0xf]
    %v1813 = vld [vmem:[%s9] sm:$0x1]
    %v1815 = vlaneseq
    %v1816 = vshrl.u32 %v1815, 7
    %v1817 = vsub.s32 0, %v1816
    %v1818 = vrot.slane %v1813, %v1817
    %v1836 = vunpack.c.l.b16 %v1797
    %v1837 = vunpack.c.l.b16 %v1798
    %v1838 = vunpack.c.l.b16 %v1799
    %v1839 = vunpack.c.l.b16 %v1800
    %v1840 = vunpack.c.l.b16 %v1801
    %v1841 = vunpack.c.l.b16 %v1802
    %v1842 = vunpack.c.l.b16 %v1803
    %v1843 = vunpack.c.l.b16 %v1804
    %v1844 = vunpack.c.l.b16 %v1805
    %v1845 = vunpack.c.l.b16 %v1806
    %v1846 = vunpack.c.l.b16 %v1807
    %v1847 = vunpack.c.l.b16 %v1808
    %v1848 = vunpack.c.l.b16 %v1809
    %v1849 = vunpack.c.l.b16 %v1810
    %v1850 = vunpack.c.l.b16 %v1811
    %v1851 = vunpack.c.l.b16 %v1812
    %v1852 = vpack.c.b16 %v1837, %v1836
    %v1853 = vpack.c.b16 %v1839, %v1838
    %v1854 = vpack.c.b16 %v1841, %v1840
    %v1855 = vpack.c.b16 %v1843, %v1842
    %v1856 = vpack.c.b16 %v1845, %v1844
    %v1857 = vpack.c.b16 %v1847, %v1846
    %v1858 = vpack.c.b16 %v1849, %v1848
    %v1859 = vpack.c.b16 %v1851, %v1850
    %1868 = vmatprep.subr.bf16.mxu0 0
    %1869 = vmatpush1.bf16.msra.mxu0 %v1852
    %1870 = vmatprep.subr.bf16.mxu0 0
    %1871 = vmatpush1.bf16.msra.mxu0 %v1853
    %1872 = vmatprep.subr.bf16.mxu0 0
    %1873 = vmatpush1.bf16.msra.mxu0 %v1854
    %1874 = vmatprep.subr.bf16.mxu0 0
    %1875 = vmatpush1.bf16.msra.mxu0 %v1855
    %1876 = vmatprep.subr.bf16.mxu0 0
    %1877 = vmatpush1.bf16.msra.mxu0 %v1856
    %1878 = vmatprep.subr.bf16.mxu0 0
    %1879 = vmatpush1.bf16.msra.mxu0 %v1857
    %1880 = vmatprep.subr.bf16.mxu0 0
    %1881 = vmatpush1.bf16.msra.mxu0 %v1858
    %1882 = vmatprep.subr.bf16.mxu0 0
    %1883 = vmatpush1.bf16.msra.mxu0 %v1859
    %1884 = vmatprep.subr.bf16.mxu0 0
    %1885 = vmatpush1.bf16.msra.mxu0 0
    %1886 = vmatprep.subr.bf16.mxu0 0
    %1887 = vmatpush1.bf16.msra.mxu0 0
    %1888 = vmatprep.subr.bf16.mxu0 0
    %1889 = vmatpush1.bf16.msra.mxu0 0
    %1890 = vmatprep.subr.bf16.mxu0 0
    %1891 = vmatpush1.bf16.msra.mxu0 0
    %1892 = vmatprep.subr.bf16.mxu0 0
    %1893 = vmatpush1.bf16.msra.mxu0 0
    %1894 = vmatprep.subr.bf16.mxu0 0
    %1895 = vmatpush1.bf16.msra.mxu0 0
    %1896 = vmatprep.subr.bf16.mxu0 0
    %1897 = vmatpush1.bf16.msra.mxu0 0
    %1898 = vmatprep.subr.bf16.mxu0 0
    %1899 = vmatpush1.bf16.msra.mxu0 0
    %1900 = vmatprep.mubr.bf16.mxu0 0
    %1901 = vmatmul.mubr.bf16.gmra.mrb[0].mxu0 %v1621
    %v1902 = vpop.f32.mrb[0].mxu0
    %v1903 = vadd.f32 %v1818, %v1902
    %v1904 = vpop.f32.mrb[0].mxu0
    %v1905 = vpop.f32.mrb[0].mxu0
    %v1906 = vadd.f32 %v1818, %v1905
    %v1907 = vpop.f32.mrb[0].mxu0
    %1908 = vmatprep.mubr.bf16.mxu0 0
    %1909 = vmatmul.mubr.bf16.gmra.mrb[0].mxu0 %v1622
    %v1910 = vpop.f32.mrb[0].mxu0
    %v1911 = vadd.f32 %v1818, %v1910
    %v1912 = vpop.f32.mrb[0].mxu0
    %v1913 = vpop.f32.mrb[0].mxu0
    %v1914 = vadd.f32 %v1818, %v1913
    %v1915 = vpop.f32.mrb[0].mxu0
    %1916 = vmatprep.mubr.bf16.mxu0 0
    %1917 = vmatmul.mubr.bf16.gmra.mrb[0].mxu0 %v1623
    %v1918 = vpop.f32.mrb[0].mxu0
    %v1919 = vadd.f32 %v1818, %v1918
    %v1920 = vpop.f32.mrb[0].mxu0
    %v1921 = vpop.f32.mrb[0].mxu0
    %v1922 = vadd.f32 %v1818, %v1921
    %v1923 = vpop.f32.mrb[0].mxu0
    %1924 = vmatprep.mubr.bf16.mxu0 0
    %1925 = vmatmul.mubr.bf16.gmra.mrb[0].mxu0 %v1624
    %v1926 = vpop.f32.mrb[0].mxu0
    %v1927 = vadd.f32 %v1818, %v1926
    %v1928 = vpop.f32.mrb[0].mxu0
    %v1929 = vpop.f32.mrb[0].mxu0
    %v1930 = vadd.f32 %v1818, %v1929
    %v1931 = vpop.f32.mrb[0].mxu0
    %1932 = vmatprep.mubr.bf16.mxu0 0
    %1933 = vmatmul.mubr.bf16.gmra.mrb[0].mxu0 %v1625
    %v1934 = vpop.f32.mrb[0].mxu0
    %v1935 = vadd.f32 %v1818, %v1934
    %v1936 = vpop.f32.mrb[0].mxu0
    %v1937 = vpop.f32.mrb[0].mxu0
    %v1938 = vadd.f32 %v1818, %v1937
    %v1939 = vpop.f32.mrb[0].mxu0
    %1940 = vmatprep.mubr.bf16.mxu0 0
    %1941 = vmatmul.mubr.bf16.gmra.mrb[0].mxu0 %v1626
    %v1942 = vpop.f32.mrb[0].mxu0
    %v1943 = vadd.f32 %v1818, %v1942
    %v1944 = vpop.f32.mrb[0].mxu0
    %v1945 = vpop.f32.mrb[0].mxu0
    %v1946 = vadd.f32 %v1818, %v1945
    %v1947 = vpop.f32.mrb[0].mxu0
    %1948 = vmatprep.mubr.bf16.mxu0 0
    %1949 = vmatmul.mubr.bf16.gmra.mrb[0].mxu0 %v1627
    %v1950 = vpop.f32.mrb[0].mxu0
    %v1951 = vadd.f32 %v1818, %v1950
    %v1952 = vpop.f32.mrb[0].mxu0
    %v1953 = vpop.f32.mrb[0].mxu0
    %v1954 = vadd.f32 %v1818, %v1953
    %v1955 = vpop.f32.mrb[0].mxu0
    %1956 = vmatprep.mubr.bf16.mxu0 0
    %1957 = vmatmul.mubr.bf16.gmra.mrb[0].mxu0 %v1628
    %v1958 = vpop.f32.mrb[0].mxu0
    %v1959 = vadd.f32 %v1818, %v1958
    %v1960 = vpop.f32.mrb[0].mxu0
    %v1961 = vpop.f32.mrb[0].mxu0
    %v1962 = vadd.f32 %v1818, %v1961
    %v1963 = vpop.f32.mrb[0].mxu0
    %1964 = vdwg.mxu0
    %v1965 = vmax.f32 %v1903, -20.0
    %v1966 = vmax.f32 %v1906, -20.0
    %v1967 = vmax.f32 %v1911, -20.0
    %v1968 = vmax.f32 %v1914, -20.0
    %v1969 = vmax.f32 %v1919, -20.0
    %v1970 = vmax.f32 %v1922, -20.0
    %v1971 = vmax.f32 %v1927, -20.0
    %v1972 = vmax.f32 %v1930, -20.0
    %v1973 = vmax.f32 %v1935, -20.0
    %v1974 = vmax.f32 %v1938, -20.0
    %v1975 = vmax.f32 %v1943, -20.0
    %v1976 = vmax.f32 %v1946, -20.0
    %v1977 = vmax.f32 %v1951, -20.0
    %v1978 = vmax.f32 %v1954, -20.0
    %v1979 = vmax.f32 %v1959, -20.0
    %v1980 = vmax.f32 %v1962, -20.0
    %v1981 = vmin.f32 %v1965, 2.0
    %v1982 = vmin.f32 %v1966, 2.0
    %v1983 = vmin.f32 %v1967, 2.0
    %v1984 = vmin.f32 %v1968, 2.0
    %v1985 = vmin.f32 %v1969, 2.0
    %v1986 = vmin.f32 %v1970, 2.0
    %v1987 = vmin.f32 %v1971, 2.0
    %v1988 = vmin.f32 %v1972, 2.0
    %v1989 = vmin.f32 %v1973, 2.0
    %v1990 = vmin.f32 %v1974, 2.0
    %v1991 = vmin.f32 %v1975, 2.0
    %v1992 = vmin.f32 %v1976, 2.0
    %v1993 = vmin.f32 %v1977, 2.0
    %v1994 = vmin.f32 %v1978, 2.0
    %v1995 = vmin.f32 %v1979, 2.0
    %v1996 = vmin.f32 %v1980, 2.0
    %v1997 = vmul.f32 %v1981, 1.442695
    %v1998 = vpow.pop %v1997
    %v1999 = vmul.f32 %v1982, 1.442695
    %v2000 = vpow.pop %v1999
    %v2001 = vmul.f32 %v1983, 1.442695
    %v2002 = vpow.pop %v2001
    %v2003 = vmul.f32 %v1984, 1.442695
    %v2004 = vpow.pop %v2003
    %v2005 = vmul.f32 %v1985, 1.442695
    %v2006 = vpow.pop %v2005
    %v2007 = vmul.f32 %v1986, 1.442695
    %v2008 = vpow.pop %v2007
    %v2009 = vmul.f32 %v1987, 1.442695
    %v2010 = vpow.pop %v2009
    %v2011 = vmul.f32 %v1988, 1.442695
    %v2012 = vpow.pop %v2011
    %v2013 = vmul.f32 %v1989, 1.442695
    %v2014 = vpow.pop %v2013
    %v2015 = vmul.f32 %v1990, 1.442695
    %v2016 = vpow.pop %v2015
    %v2017 = vmul.f32 %v1991, 1.442695
    %v2018 = vpow.pop %v2017
    %v2019 = vmul.f32 %v1992, 1.442695
    %v2020 = vpow.pop %v2019
    %v2021 = vmul.f32 %v1993, 1.442695
    %v2022 = vpow.pop %v2021
    %v2023 = vmul.f32 %v1994, 1.442695
    %v2024 = vpow.pop %v2023
    %v2025 = vmul.f32 %v1995, 1.442695
    %v2026 = vpow.pop %v2025
    %v2027 = vmul.f32 %v1996, 1.442695
    %v2028 = vpow.pop %v2027
    %v2029 = vld [vmem:[#allocation5] sm:$0xff]
    %v2030 = vld [vmem:[#allocation5 + $0x8] sm:$0xff]
    %v2031 = vld [vmem:[#allocation5 + $0x10] sm:$0xff]
    %v2032 = vld [vmem:[#allocation5 + $0x18] sm:$0xff]
    %v2033 = vld [vmem:[#allocation5 + $0x20] sm:$0xff]
    %v2034 = vld [vmem:[#allocation5 + $0x28] sm:$0xff]
    %v2035 = vld [vmem:[#allocation5 + $0x30] sm:$0xff]
    %v2036 = vld [vmem:[#allocation5 + $0x38] sm:$0xff]
    %v2037 = vld [vmem:[#allocation5 + $0x40] sm:$0xff]
    %v2038 = vld [vmem:[#allocation5 + $0x48] sm:$0xff]
    %v2039 = vld [vmem:[#allocation5 + $0x50] sm:$0xff]
    %v2040 = vld [vmem:[#allocation5 + $0x58] sm:$0xff]
    %v2041 = vld [vmem:[#allocation5 + $0x60] sm:$0xff]
    %v2042 = vld [vmem:[#allocation5 + $0x68] sm:$0xff]
    %v2043 = vld [vmem:[#allocation5 + $0x70] sm:$0xff]
    %v2044 = vld [vmem:[#allocation5 + $0x78] sm:$0xff]
    %v2045 = vmul.f32 %v1998, %v2029
    %v2046 = vmul.f32 %v2000, %v2030
    %v2047 = vmul.f32 %v2002, %v2031
    %v2048 = vmul.f32 %v2004, %v2032
    %v2049 = vmul.f32 %v2006, %v2033
    %v2050 = vmul.f32 %v2008, %v2034
    %v2051 = vmul.f32 %v2010, %v2035
    %v2052 = vmul.f32 %v2012, %v2036
    %v2053 = vmul.f32 %v2014, %v2037
    %v2054 = vmul.f32 %v2016, %v2038
    %v2055 = vmul.f32 %v2018, %v2039
    %v2056 = vmul.f32 %v2020, %v2040
    %v2057 = vmul.f32 %v2022, %v2041
    %v2058 = vmul.f32 %v2024, %v2042
    %v2059 = vmul.f32 %v2026, %v2043
    %v2060 = vmul.f32 %v2028, %v2044
    %v2061 = vadd.f32 %v1735, %v2045
    %v2062 = vadd.f32 %v1738, %v2046
    %v2063 = vadd.f32 %v1743, %v2047
    %v2064 = vadd.f32 %v1746, %v2048
    %v2065 = vadd.f32 %v1751, %v2049
    %v2066 = vadd.f32 %v1754, %v2050
    %v2067 = vadd.f32 %v1759, %v2051
    %v2068 = vadd.f32 %v1762, %v2052
    %v2069 = vadd.f32 %v1767, %v2053
    %v2070 = vadd.f32 %v1770, %v2054
    %v2071 = vadd.f32 %v1775, %v2055
    %v2072 = vadd.f32 %v1778, %v2056
    %v2073 = vadd.f32 %v1783, %v2057
    %v2074 = vadd.f32 %v1786, %v2058
    %v2075 = vadd.f32 %v1791, %v2059
    %v2076 = vadd.f32 %v1794, %v2060
    %v2077 = vsub.f32 %v2061, %v1735
    %v2078 = vsub.f32 %v2062, %v1738
    %v2079 = vsub.f32 %v2063, %v1743
    %v2080 = vsub.f32 %v2064, %v1746
    %v2081 = vsub.f32 %v2065, %v1751
    %v2082 = vsub.f32 %v2066, %v1754
    %v2083 = vsub.f32 %v2067, %v1759
    %v2084 = vsub.f32 %v2068, %v1762
    %v2085 = vsub.f32 %v2069, %v1767
    %v2086 = vsub.f32 %v2070, %v1770
    %v2087 = vsub.f32 %v2071, %v1775
    %v2088 = vsub.f32 %v2072, %v1778
    %v2089 = vsub.f32 %v2073, %v1783
    %v2090 = vsub.f32 %v2074, %v1786
    %v2091 = vsub.f32 %v2075, %v1791
    %v2092 = vsub.f32 %v2076, %v1794
    %v2093 = vrcp.pop %v1998
    %v2094 = vmul.f32 %v2077, %v2093
    %v2095 = vrcp.pop %v2000
    %v2096 = vmul.f32 %v2078, %v2095
    %v2097 = vrcp.pop %v2002
    %v2098 = vmul.f32 %v2079, %v2097
    %v2099 = vrcp.pop %v2004
    %v2100 = vmul.f32 %v2080, %v2099
    %v2101 = vrcp.pop %v2006
    %v2102 = vmul.f32 %v2081, %v2101
    %v2103 = vrcp.pop %v2008
    %v2104 = vmul.f32 %v2082, %v2103
    %v2105 = vrcp.pop %v2010
    %v2106 = vmul.f32 %v2083, %v2105
    %v2107 = vrcp.pop %v2012
    %v2108 = vmul.f32 %v2084, %v2107
    %v2109 = vrcp.pop %v2014
    %v2110 = vmul.f32 %v2085, %v2109
    %v2111 = vrcp.pop %v2016
    %v2112 = vmul.f32 %v2086, %v2111
    %v2113 = vrcp.pop %v2018
    %v2114 = vmul.f32 %v2087, %v2113
    %v2115 = vrcp.pop %v2020
    %v2116 = vmul.f32 %v2088, %v2115
    %v2117 = vrcp.pop %v2022
    %v2118 = vmul.f32 %v2089, %v2117
    %v2119 = vrcp.pop %v2024
    %v2120 = vmul.f32 %v2090, %v2119
    %v2121 = vrcp.pop %v2026
    %v2122 = vmul.f32 %v2091, %v2121
    %v2123 = vrcp.pop %v2028
    %v2124 = vmul.f32 %v2092, %v2123
    %v2125 = vmul.f32 %v2094, -0.5
    %v2126 = vmul.f32 %v2096, -0.5
    %v2127 = vmul.f32 %v2098, -0.5
    %v2128 = vmul.f32 %v2100, -0.5
    %v2129 = vmul.f32 %v2102, -0.5
    %v2130 = vmul.f32 %v2104, -0.5
    %v2131 = vmul.f32 %v2106, -0.5
    %v2132 = vmul.f32 %v2108, -0.5
    %v2133 = vmul.f32 %v2110, -0.5
    %v2134 = vmul.f32 %v2112, -0.5
    %v2135 = vmul.f32 %v2114, -0.5
    %v2136 = vmul.f32 %v2116, -0.5
    %v2137 = vmul.f32 %v2118, -0.5
    %v2138 = vmul.f32 %v2120, -0.5
    %v2139 = vmul.f32 %v2122, -0.5
    %v2140 = vmul.f32 %v2124, -0.5
    %v2141 = vmul.f32 %v2125, %v2094
    %v2142 = vmul.f32 %v2126, %v2096
    %v2143 = vmul.f32 %v2127, %v2098
    %v2144 = vmul.f32 %v2128, %v2100
    %v2145 = vmul.f32 %v2129, %v2102
    %v2146 = vmul.f32 %v2130, %v2104
    %v2147 = vmul.f32 %v2131, %v2106
    %v2148 = vmul.f32 %v2132, %v2108
    %v2149 = vmul.f32 %v2133, %v2110
    %v2150 = vmul.f32 %v2134, %v2112
    %v2151 = vmul.f32 %v2135, %v2114
    %v2152 = vmul.f32 %v2136, %v2116
    %v2153 = vmul.f32 %v2137, %v2118
    %v2154 = vmul.f32 %v2138, %v2120
    %v2155 = vmul.f32 %v2139, %v2122
    %v2156 = vmul.f32 %v2140, %v2124
    %v2157 = vsub.f32 %v2141, %v1981
    %v2158 = vsub.f32 %v2142, %v1982
    %v2159 = vsub.f32 %v2143, %v1983
    %v2160 = vsub.f32 %v2144, %v1984
    %v2161 = vsub.f32 %v2145, %v1985
    %v2162 = vsub.f32 %v2146, %v1986
    %v2163 = vsub.f32 %v2147, %v1987
    %v2164 = vsub.f32 %v2148, %v1988
    %v2165 = vsub.f32 %v2149, %v1989
    %v2166 = vsub.f32 %v2150, %v1990
    %v2167 = vsub.f32 %v2151, %v1991
    %v2168 = vsub.f32 %v2152, %v1992
    %v2169 = vsub.f32 %v2153, %v1993
    %v2170 = vsub.f32 %v2154, %v1994
    %v2171 = vsub.f32 %v2155, %v1995
    %v2172 = vsub.f32 %v2156, %v1996
    %v2173 = vsub.f32 %v2157, 0.9189385
    %v2174 = vsub.f32 %v2158, 0.9189385
    %v2175 = vsub.f32 %v2159, 0.9189385
    %v2176 = vsub.f32 %v2160, 0.9189385
    %v2177 = vsub.f32 %v2161, 0.9189385
    %v2178 = vsub.f32 %v2162, 0.9189385
    %v2179 = vsub.f32 %v2163, 0.9189385
    %v2180 = vsub.f32 %v2164, 0.9189385
    %v2181 = vsub.f32 %v2165, 0.9189385
    %v2182 = vsub.f32 %v2166, 0.9189385
    %v2183 = vsub.f32 %v2167, 0.9189385
    %v2184 = vsub.f32 %v2168, 0.9189385
    %v2185 = vsub.f32 %v2169, 0.9189385
    %v2186 = vsub.f32 %v2170, 0.9189385
    %v2187 = vsub.f32 %v2171, 0.9189385
    %v2188 = vsub.f32 %v2172, 0.9189385
    %v2189 = vmul.f32 %v2061, -2.0
    %v2190 = vmul.f32 %v2062, -2.0
    %v2191 = vmul.f32 %v2063, -2.0
    %v2192 = vmul.f32 %v2064, -2.0
    %v2193 = vmul.f32 %v2065, -2.0
    %v2194 = vmul.f32 %v2066, -2.0
    %v2195 = vmul.f32 %v2067, -2.0
    %v2196 = vmul.f32 %v2068, -2.0
    %v2197 = vmul.f32 %v2069, -2.0
    %v2198 = vmul.f32 %v2070, -2.0
    %v2199 = vmul.f32 %v2071, -2.0
    %v2200 = vmul.f32 %v2072, -2.0
    %v2201 = vmul.f32 %v2073, -2.0
    %v2202 = vmul.f32 %v2074, -2.0
    %v2203 = vmul.f32 %v2075, -2.0
    %v2204 = vmul.f32 %v2076, -2.0
    %v2205 = vmax.f32 %v2189, 0.0
    %v2206 = vmax.f32 %v2190, 0.0
    %v2207 = vmax.f32 %v2191, 0.0
    %v2208 = vmax.f32 %v2192, 0.0
    %v2209 = vmax.f32 %v2193, 0.0
    %v2210 = vmax.f32 %v2194, 0.0
    %v2211 = vmax.f32 %v2195, 0.0
    %v2212 = vmax.f32 %v2196, 0.0
    %v2213 = vmax.f32 %v2197, 0.0
    %v2214 = vmax.f32 %v2198, 0.0
    %v2215 = vmax.f32 %v2199, 0.0
    %v2216 = vmax.f32 %v2200, 0.0
    %v2217 = vmax.f32 %v2201, 0.0
    %v2218 = vmax.f32 %v2202, 0.0
    %v2219 = vmax.f32 %v2203, 0.0
    %v2220 = vmax.f32 %v2204, 0.0
    %v2221 = vand.u32 2147483647, %v2189
    %v2222 = vand.u32 2147483647, %v2190
    %v2223 = vand.u32 2147483647, %v2191
    %v2224 = vand.u32 2147483647, %v2192
    %v2225 = vand.u32 2147483647, %v2193
    %v2226 = vand.u32 2147483647, %v2194
    %v2227 = vand.u32 2147483647, %v2195
    %v2228 = vand.u32 2147483647, %v2196
    %v2229 = vand.u32 2147483647, %v2197
    %v2230 = vand.u32 2147483647, %v2198
    %v2231 = vand.u32 2147483647, %v2199
    %v2232 = vand.u32 2147483647, %v2200
    %v2233 = vand.u32 2147483647, %v2201
    %v2234 = vand.u32 2147483647, %v2202
    %v2235 = vand.u32 2147483647, %v2203
    %v2236 = vand.u32 2147483647, %v2204
    %v2237 = vsub.f32 0.0, %v2221
    %v2238 = vsub.f32 0.0, %v2222
    %v2239 = vsub.f32 0.0, %v2223
    %v2240 = vsub.f32 0.0, %v2224
    %v2241 = vsub.f32 0.0, %v2225
    %v2242 = vsub.f32 0.0, %v2226
    %v2243 = vsub.f32 0.0, %v2227
    %v2244 = vsub.f32 0.0, %v2228
    %v2245 = vsub.f32 0.0, %v2229
    %v2246 = vsub.f32 0.0, %v2230
    %v2247 = vsub.f32 0.0, %v2231
    %v2248 = vsub.f32 0.0, %v2232
    %v2249 = vsub.f32 0.0, %v2233
    %v2250 = vsub.f32 0.0, %v2234
    %v2251 = vsub.f32 0.0, %v2235
    %v2252 = vsub.f32 0.0, %v2236
    %v2253 = vmul.f32 %v2237, 1.442695
    %v2254 = vpow.pop %v2253
    %v2255 = vmul.f32 %v2238, 1.442695
    %v2256 = vpow.pop %v2255
    %v2257 = vmul.f32 %v2239, 1.442695
    %v2258 = vpow.pop %v2257
    %v2259 = vmul.f32 %v2240, 1.442695
    %v2260 = vpow.pop %v2259
    %v2261 = vmul.f32 %v2241, 1.442695
    %v2262 = vpow.pop %v2261
    %v2263 = vmul.f32 %v2242, 1.442695
    %v2264 = vpow.pop %v2263
    %v2265 = vmul.f32 %v2243, 1.442695
    %v2266 = vpow.pop %v2265
    %v2267 = vmul.f32 %v2244, 1.442695
    %v2268 = vpow.pop %v2267
    %v2269 = vmul.f32 %v2245, 1.442695
    %v2270 = vpow.pop %v2269
    %v2271 = vmul.f32 %v2246, 1.442695
    %v2272 = vpow.pop %v2271
    %v2273 = vmul.f32 %v2247, 1.442695
    %v2274 = vpow.pop %v2273
    %v2275 = vmul.f32 %v2248, 1.442695
    %v2276 = vpow.pop %v2275
    %v2277 = vmul.f32 %v2249, 1.442695
    %v2278 = vpow.pop %v2277
    %v2279 = vmul.f32 %v2250, 1.442695
    %v2280 = vpow.pop %v2279
    %v2281 = vmul.f32 %v2251, 1.442695
    %v2282 = vpow.pop %v2281
    %v2283 = vmul.f32 %v2252, 1.442695
    %v2284 = vpow.pop %v2283
    %v2285 = vadd.f32 %v2254, 1.0
    %v2286 = vadd.f32 %v2256, 1.0
    %v2287 = vadd.f32 %v2258, 1.0
    %v2288 = vadd.f32 %v2260, 1.0
    %v2289 = vadd.f32 %v2262, 1.0
    %v2290 = vadd.f32 %v2264, 1.0
    %v2291 = vadd.f32 %v2266, 1.0
    %v2292 = vadd.f32 %v2268, 1.0
    %v2293 = vadd.f32 %v2270, 1.0
    %v2294 = vadd.f32 %v2272, 1.0
    %v2295 = vadd.f32 %v2274, 1.0
    %v2296 = vadd.f32 %v2276, 1.0
    %v2297 = vadd.f32 %v2278, 1.0
    %v2298 = vadd.f32 %v2280, 1.0
    %v2299 = vadd.f32 %v2282, 1.0
    %v2300 = vadd.f32 %v2284, 1.0
    %v2301 = vlog2.pop %v2285
    %v2302 = vmul.f32 %v2301, 0.6931472
    %v2303 = vlog2.pop %v2286
    %v2304 = vmul.f32 %v2303, 0.6931472
    %v2305 = vlog2.pop %v2287
    %v2306 = vmul.f32 %v2305, 0.6931472
    %v2307 = vlog2.pop %v2288
    %v2308 = vmul.f32 %v2307, 0.6931472
    %v2309 = vlog2.pop %v2289
    %v2310 = vmul.f32 %v2309, 0.6931472
    %v2311 = vlog2.pop %v2290
    %v2312 = vmul.f32 %v2311, 0.6931472
    %v2313 = vlog2.pop %v2291
    %v2314 = vmul.f32 %v2313, 0.6931472
    %v2315 = vlog2.pop %v2292
    %v2316 = vmul.f32 %v2315, 0.6931472
    %v2317 = vlog2.pop %v2293
    %v2318 = vmul.f32 %v2317, 0.6931472
    %v2319 = vlog2.pop %v2294
    %v2320 = vmul.f32 %v2319, 0.6931472
    %v2321 = vlog2.pop %v2295
    %v2322 = vmul.f32 %v2321, 0.6931472
    %v2323 = vlog2.pop %v2296
    %v2324 = vmul.f32 %v2323, 0.6931472
    %v2325 = vlog2.pop %v2297
    %v2326 = vmul.f32 %v2325, 0.6931472
    %v2327 = vlog2.pop %v2298
    %v2328 = vmul.f32 %v2327, 0.6931472
    %v2329 = vlog2.pop %v2299
    %v2330 = vmul.f32 %v2329, 0.6931472
    %v2331 = vlog2.pop %v2300
    %v2332 = vmul.f32 %v2331, 0.6931472
    %v2333 = vadd.f32 %v2205, %v2302
    %v2334 = vadd.f32 %v2206, %v2304
    %v2335 = vadd.f32 %v2207, %v2306
    %v2336 = vadd.f32 %v2208, %v2308
    %v2337 = vadd.f32 %v2209, %v2310
    %v2338 = vadd.f32 %v2210, %v2312
    %v2339 = vadd.f32 %v2211, %v2314
    %v2340 = vadd.f32 %v2212, %v2316
    %v2341 = vadd.f32 %v2213, %v2318
    %v2342 = vadd.f32 %v2214, %v2320
    %v2343 = vadd.f32 %v2215, %v2322
    %v2344 = vadd.f32 %v2216, %v2324
    %v2345 = vadd.f32 %v2217, %v2326
    %v2346 = vadd.f32 %v2218, %v2328
    %v2347 = vadd.f32 %v2219, %v2330
    %v2348 = vadd.f32 %v2220, %v2332
    %v2349 = vsub.f32 0.6931472, %v2061
    %v2350 = vsub.f32 0.6931472, %v2062
    %v2351 = vsub.f32 0.6931472, %v2063
    %v2352 = vsub.f32 0.6931472, %v2064
    %v2353 = vsub.f32 0.6931472, %v2065
    %v2354 = vsub.f32 0.6931472, %v2066
    %v2355 = vsub.f32 0.6931472, %v2067
    %v2356 = vsub.f32 0.6931472, %v2068
    %v2357 = vsub.f32 0.6931472, %v2069
    %v2358 = vsub.f32 0.6931472, %v2070
    %v2359 = vsub.f32 0.6931472, %v2071
    %v2360 = vsub.f32 0.6931472, %v2072
    %v2361 = vsub.f32 0.6931472, %v2073
    %v2362 = vsub.f32 0.6931472, %v2074
    %v2363 = vsub.f32 0.6931472, %v2075
    %v2364 = vsub.f32 0.6931472, %v2076
    %v2365 = vsub.f32 %v2349, %v2333
    %v2366 = vsub.f32 %v2350, %v2334
    %v2367 = vsub.f32 %v2351, %v2335
    %v2368 = vsub.f32 %v2352, %v2336
    %v2369 = vsub.f32 %v2353, %v2337
    %v2370 = vsub.f32 %v2354, %v2338
    %v2371 = vsub.f32 %v2355, %v2339
    %v2372 = vsub.f32 %v2356, %v2340
    %v2373 = vsub.f32 %v2357, %v2341
    %v2374 = vsub.f32 %v2358, %v2342
    %v2375 = vsub.f32 %v2359, %v2343
    %v2376 = vsub.f32 %v2360, %v2344
    %v2377 = vsub.f32 %v2361, %v2345
    %v2378 = vsub.f32 %v2362, %v2346
    %v2379 = vsub.f32 %v2363, %v2347
    %v2380 = vsub.f32 %v2364, %v2348
    %v2381 = vmul.f32 %v2365, 2.0
    %v2382 = vmul.f32 %v2366, 2.0
    %v2383 = vmul.f32 %v2367, 2.0
    %v2384 = vmul.f32 %v2368, 2.0
    %v2385 = vmul.f32 %v2369, 2.0
    %v2386 = vmul.f32 %v2370, 2.0
    %v2387 = vmul.f32 %v2371, 2.0
    %v2388 = vmul.f32 %v2372, 2.0
    %v2389 = vmul.f32 %v2373, 2.0
    %v2390 = vmul.f32 %v2374, 2.0
    %v2391 = vmul.f32 %v2375, 2.0
    %v2392 = vmul.f32 %v2376, 2.0
    %v2393 = vmul.f32 %v2377, 2.0
    %v2394 = vmul.f32 %v2378, 2.0
    %v2395 = vmul.f32 %v2379, 2.0
    %v2396 = vmul.f32 %v2380, 2.0
    %v2397 = vlaneseq
    %v2398 = vand.u32 %v2397, 127
    %vm2399 = vcmp.lt.s32.totalorder %v2398, 6
    %v2400 = vsub.f32 %v2173, %v2381
    %v2401 = vsub.f32 %v2174, %v2382
    %v2402 = vsub.f32 %v2175, %v2383
    %v2403 = vsub.f32 %v2176, %v2384
    %v2404 = vsub.f32 %v2177, %v2385
    %v2405 = vsub.f32 %v2178, %v2386
    %v2406 = vsub.f32 %v2179, %v2387
    %v2407 = vsub.f32 %v2180, %v2388
    %v2408 = vsub.f32 %v2181, %v2389
    %v2409 = vsub.f32 %v2182, %v2390
    %v2410 = vsub.f32 %v2183, %v2391
    %v2411 = vsub.f32 %v2184, %v2392
    %v2412 = vsub.f32 %v2185, %v2393
    %v2413 = vsub.f32 %v2186, %v2394
    %v2414 = vsub.f32 %v2187, %v2395
    %v2415 = vsub.f32 %v2188, %v2396
    %v2416 = vsel %vm2399, %v2400, 0.0
    %v2417 = vsel %vm2399, %v2401, 0.0
    %v2418 = vsel %vm2399, %v2402, 0.0
    %v2419 = vsel %vm2399, %v2403, 0.0
    %v2420 = vsel %vm2399, %v2404, 0.0
    %v2421 = vsel %vm2399, %v2405, 0.0
    %v2422 = vsel %vm2399, %v2406, 0.0
    %v2423 = vsel %vm2399, %v2407, 0.0
    %v2424 = vsel %vm2399, %v2408, 0.0
    %v2425 = vsel %vm2399, %v2409, 0.0
    %v2426 = vsel %vm2399, %v2410, 0.0
    %v2427 = vsel %vm2399, %v2411, 0.0
    %v2428 = vsel %vm2399, %v2412, 0.0
    %v2429 = vsel %vm2399, %v2413, 0.0
    %v2430 = vsel %vm2399, %v2414, 0.0
    %v2431 = vsel %vm2399, %v2415, 0.0
    %2432 = vadd.xlane.f32.xlu0 %v2416
    %v2433 = vpop.xlane.xlu0 %2432
    %2434 = vadd.xlane.f32.xlu0 %v2417
    %v2435 = vpop.xlane.xlu0 %2434
    %2436 = vadd.xlane.f32.xlu0 %v2418
    %v2437 = vpop.xlane.xlu0 %2436
    %2438 = vadd.xlane.f32.xlu0 %v2419
    %v2439 = vpop.xlane.xlu0 %2438
    %2440 = vadd.xlane.f32.xlu0 %v2420
    %v2441 = vpop.xlane.xlu0 %2440
    %2442 = vadd.xlane.f32.xlu0 %v2421
    %v2443 = vpop.xlane.xlu0 %2442
    %2444 = vadd.xlane.f32.xlu0 %v2422
    %v2445 = vpop.xlane.xlu0 %2444
    %2446 = vadd.xlane.f32.xlu0 %v2423
    %v2447 = vpop.xlane.xlu0 %2446
    %2448 = vadd.xlane.f32.xlu0 %v2424
    %v2449 = vpop.xlane.xlu0 %2448
    %2450 = vadd.xlane.f32.xlu0 %v2425
    %v2451 = vpop.xlane.xlu0 %2450
    %2452 = vadd.xlane.f32.xlu0 %v2426
    %v2453 = vpop.xlane.xlu0 %2452
    %2454 = vadd.xlane.f32.xlu0 %v2427
    %v2455 = vpop.xlane.xlu0 %2454
    %2456 = vadd.xlane.f32.xlu0 %v2428
    %v2457 = vpop.xlane.xlu0 %2456
    %2458 = vadd.xlane.f32.xlu0 %v2429
    %v2459 = vpop.xlane.xlu0 %2458
    %2460 = vadd.xlane.f32.xlu0 %v2430
    %v2461 = vpop.xlane.xlu0 %2460
    %2462 = vadd.xlane.f32.xlu0 %v2431
    %v2463 = vpop.xlane.xlu0 %2462
    %v2464 = vtanh.pop %v2061
    %v2465 = vtanh.pop %v2062
    %v2466 = vtanh.pop %v2063
    %v2467 = vtanh.pop %v2064
    %v2468 = vtanh.pop %v2065
    %v2469 = vtanh.pop %v2066
    %v2470 = vtanh.pop %v2067
    %v2471 = vtanh.pop %v2068
    %v2472 = vtanh.pop %v2069
    %v2473 = vtanh.pop %v2070
    %v2474 = vtanh.pop %v2071
    %v2475 = vtanh.pop %v2072
    %v2476 = vtanh.pop %v2073
    %v2477 = vtanh.pop %v2074
    %v2478 = vtanh.pop %v2075
    %v2479 = vtanh.pop %v2076
    %v2480 = vmul.f32 %v2464, 2.0
    %v2481 = vmul.f32 %v2465, 2.0
    %v2482 = vmul.f32 %v2466, 2.0
    %v2483 = vmul.f32 %v2467, 2.0
    %v2484 = vmul.f32 %v2468, 2.0
    %v2485 = vmul.f32 %v2469, 2.0
    %v2486 = vmul.f32 %v2470, 2.0
    %v2487 = vmul.f32 %v2471, 2.0
    %v2488 = vmul.f32 %v2472, 2.0
    %v2489 = vmul.f32 %v2473, 2.0
    %v2490 = vmul.f32 %v2474, 2.0
    %v2491 = vmul.f32 %v2475, 2.0
    %v2492 = vmul.f32 %v2476, 2.0
    %v2493 = vmul.f32 %v2477, 2.0
    %v2494 = vmul.f32 %v2478, 2.0
    %v2495 = vmul.f32 %v2479, 2.0
    %2496 = vst [vmem:[#allocation13] sm:$0xff] %v2480
    %2497 = vst [vmem:[#allocation13 + $0x8] sm:$0xff] %v2481
    %2498 = vst [vmem:[#allocation13 + $0x10] sm:$0xff] %v2482
    %2499 = vst [vmem:[#allocation13 + $0x18] sm:$0xff] %v2483
    %2500 = vst [vmem:[#allocation13 + $0x20] sm:$0xff] %v2484
    %2501 = vst [vmem:[#allocation13 + $0x28] sm:$0xff] %v2485
    %2502 = vst [vmem:[#allocation13 + $0x30] sm:$0xff] %v2486
    %2503 = vst [vmem:[#allocation13 + $0x38] sm:$0xff] %v2487
    %2504 = vst [vmem:[#allocation13 + $0x40] sm:$0xff] %v2488
    %2505 = vst [vmem:[#allocation13 + $0x48] sm:$0xff] %v2489
    %2506 = vst [vmem:[#allocation13 + $0x50] sm:$0xff] %v2490
    %2507 = vst [vmem:[#allocation13 + $0x58] sm:$0xff] %v2491
    %2508 = vst [vmem:[#allocation13 + $0x60] sm:$0xff] %v2492
    %2509 = vst [vmem:[#allocation13 + $0x68] sm:$0xff] %v2493
    %2510 = vst [vmem:[#allocation13 + $0x70] sm:$0xff] %v2494
    %2511 = vst [vmem:[#allocation13 + $0x78] sm:$0xff] %v2495
    %2512 = vst [vmem:[#allocation14] sm:$0xff] %v2433
    %2513 = vst [vmem:[#allocation14 + $0x8] sm:$0xff] %v2435
    %2514 = vst [vmem:[#allocation14 + $0x10] sm:$0xff] %v2437
    %2515 = vst [vmem:[#allocation14 + $0x18] sm:$0xff] %v2439
    %2516 = vst [vmem:[#allocation14 + $0x20] sm:$0xff] %v2441
    %2517 = vst [vmem:[#allocation14 + $0x28] sm:$0xff] %v2443
    %2518 = vst [vmem:[#allocation14 + $0x30] sm:$0xff] %v2445
    %2519 = vst [vmem:[#allocation14 + $0x38] sm:$0xff] %v2447
    %2520 = vst [vmem:[#allocation14 + $0x40] sm:$0xff] %v2449
    %2521 = vst [vmem:[#allocation14 + $0x48] sm:$0xff] %v2451
    %2522 = vst [vmem:[#allocation14 + $0x50] sm:$0xff] %v2453
    %2523 = vst [vmem:[#allocation14 + $0x58] sm:$0xff] %v2455
    %2524 = vst [vmem:[#allocation14 + $0x60] sm:$0xff] %v2457
    %2525 = vst [vmem:[#allocation14 + $0x68] sm:$0xff] %v2459
    %2526 = vst [vmem:[#allocation14 + $0x70] sm:$0xff] %v2461
    %2527 = vst [vmem:[#allocation14 + $0x78] sm:$0xff] %v2463
    // Predicated region
    $region66: #{tpu_custom_call.1} parent=1 // pred_check
      _
    $region67: #{tpu_custom_call.1} parent=1 // pred_check_branch
      %2529 = sbr.rel (0) target = $region69
    $region68: #{tpu_custom_call.1} parent=1 // pred_region
      %s2531 = ssub.s32 2048, 2048
      %2532 = vsyncadd [#allocation4], %s2531
      %s2533 = sshll.u32 [#allocation13], 4
      %s2534 = int_to_ptr.vmem [resolvable:$true] %s2533
      %2539 = dma.vmem_to_hbm [thread:$0]  %s2534, 2048, %s10, [#allocation4], 128, 128, 8
    $region69: #{tpu_custom_call.1} parent=1 // pred_fallthru
      _
    // Predicated region
    $region70: #{tpu_custom_call.1} parent=1 // pred_check
      _
    $region71: #{tpu_custom_call.1} parent=1 // pred_check_branch
      %2541 = sbr.rel (0) target = $region73
    $region72: #{tpu_custom_call.1} parent=1 // pred_region
      %s2543 = ssub.s32 2048, 2048
      %2544 = vsyncadd [#allocation15], %s2543
      %s2545 = sshll.u32 [#allocation14], 4
      %s2546 = int_to_ptr.vmem [resolvable:$true] %s2545
      %2551 = dma.vmem_to_hbm [thread:$0]  %s2546, 2048, %s11, [#allocation15], 128, 128, 8
    $region73: #{tpu_custom_call.1} parent=1 // pred_fallthru
      _
    // Predicated region
    $region74: #{tpu_custom_call.1} parent=1 // pred_check
      _
    $region75: #{tpu_custom_call.1} parent=1 // pred_check_branch
      %2553 = sbr.rel (0) target = $region77
    $region76: #{tpu_custom_call.1} parent=1 // pred_region
      %2554 = dma.done [#allocation4], 2048
    $region77: #{tpu_custom_call.1} parent=1 // pred_fallthru
      _
    // Predicated region
    $region78: #{tpu_custom_call.1} parent=1 // pred_check
      _
    $region79: #{tpu_custom_call.1} parent=1 // pred_check_branch
      %2556 = sbr.rel (0) target = $region81
    $region80: #{tpu_custom_call.1} parent=1 // pred_region
      %2557 = dma.done [#allocation15], 2048
    $region81: #{tpu_custom_call.1} parent=1 // pred_fallthru
      _
    %2558 = vsyncpa [#allocation3], 1
    %2559 = vsyncpa [#allocation6], 1
    %2560 = vsyncpa [#allocation9], 1
    %2561 = vsyncpa [#allocation12], 1
    %2562 = vsyncpa [#allocation4], 1
    %2563 = vsyncpa [#allocation15], 1

</llo_original>
